<compile_context>
chip_gen: v6e
topology: v6e:2x2x1
jax: 0.10.0
libtpu: 0.0.40
codegen_flags: <defaults>
</compile_context>

<pallas_src>
import math

import jax
import jax.numpy as jnp
from jax.experimental import pallas as pl
from jax.experimental.pallas import tpu as pltpu  # noqa: F401  (TPU backend)


# ----------------------------- fused LSTM+FC kernel ----------------------------
def _make_fused_kernel(num_layers, T, B, H):
    """Builds a kernel: x_flat, (w_ih, w_hh, b) * L, fc_w, fc_b -> padded logits."""

    def kernel(*refs):
        # refs = [x, (w_ih, w_hh, b) * num_layers, fc_w, fc_b, out]
        x_ref = refs[0]
        layer_refs = refs[1:1 + 3 * num_layers]
        fc_w_ref = refs[1 + 3 * num_layers]
        fc_b_ref = refs[2 + 3 * num_layers]
        out_ref = refs[3 + 3 * num_layers]

        # seq is the layer input, flattened time-major: row index = t*B + b.
        seq = x_ref[...]                                    # (T*B, Din)
        h_last = None

        for layer in range(num_layers):
            w_ih = layer_refs[3 * layer][...]               # (Din, 4H)
            w_hh = layer_refs[3 * layer + 1][...]           # (H,   4H)
            b = layer_refs[3 * layer + 2][...]              # (1,   4H)

            # Hoisted input projection for ALL timesteps at once.
            gx = jnp.dot(seq, w_ih,
                         preferred_element_type=jnp.float32) + b   # (T*B, 4H)

            h = jnp.zeros((B, H), jnp.float32)
            c = jnp.zeros((B, H), jnp.float32)
            outs = []
            for t in range(T):  # fully unrolled static recurrence
                gates = gx[t * B:(t + 1) * B, :] + jnp.dot(
                    h, w_hh, preferred_element_type=jnp.float32)    # (B, 4H)
                # PyTorch gate order: i, f, g, o
                i_g = jax.nn.sigmoid(gates[:, 0 * H:1 * H])
                f_g = jax.nn.sigmoid(gates[:, 1 * H:2 * H])
                g_g = jnp.tanh(gates[:, 2 * H:3 * H])
                o_g = jax.nn.sigmoid(gates[:, 3 * H:4 * H])
                c = f_g * c + i_g * g_g
                h = o_g * jnp.tanh(c)
                outs.append(h)

            h_last = h
            if layer < num_layers - 1:
                # Next layer's input sequence, kept entirely in registers/VMEM.
                seq = jnp.concatenate(outs, axis=0)          # (T*B, H)

        # Fused final Linear on the last timestep's hidden state (lane-padded C).
        logits = jnp.dot(h_last, fc_w_ref[...],
                         preferred_element_type=jnp.float32) + fc_b_ref[...]
        out_ref[...] = logits.astype(out_ref.dtype)          # (B, C_pad) lane-dense

    return kernel


# ------------------------------ Parameter setup -------------------------------
def init_params(key, input_size, hidden_size, num_layers, num_classes):
    """PyTorch-layout parameters (w_ih: (4H, Din), w_hh: (4H, H), combined bias)."""
    k = 1.0 / math.sqrt(hidden_size)
    params = {"lstm": []}
    for layer in range(num_layers):
        in_dim = input_size if layer == 0 else hidden_size
        key, k1, k2, k3, k4 = jax.random.split(key, 5)
        w_ih = jax.random.uniform(k1, (4 * hidden_size, in_dim), jnp.float32, -k, k)
        w_hh = jax.random.uniform(k2, (4 * hidden_size, hidden_size), jnp.float32, -k, k)
        b_ih = jax.random.uniform(k3, (4 * hidden_size,), jnp.float32, -k, k)
        b_hh = jax.random.uniform(k4, (4 * hidden_size,), jnp.float32, -k, k)
        params["lstm"].append((w_ih, w_hh, (b_ih + b_hh)[None, :]))
    key, k1, k2 = jax.random.split(key, 3)
    fc_w = jax.random.uniform(k1, (num_classes, hidden_size), jnp.float32, -k, k)
    fc_b = jax.random.uniform(k2, (num_classes,), jnp.float32, -k, k)[None, :]
    params["fc"] = (fc_w, fc_b)
    return params


# --------------------------------- Forward ------------------------------------
def lstm_classifier_forward(params, x):
    """x: (B, T, D) batch-first, like the PyTorch module. Returns (out, out)."""
    B, T, D = x.shape
    num_layers = len(params["lstm"])
    H = params["lstm"][0][1].shape[1]          # w_hh: (4H, H)
    fc_w, fc_b = params["fc"]
    C = fc_w.shape[0]
    C_pad = ((C + 127) // 128) * 128           # lane-dense FC output store

    # Flatten time-major: row index = t*B + b.  (Layout plumbing done in XLA.)
    x_flat = jnp.transpose(x.astype(jnp.float32), (1, 0, 2)).reshape(T * B, D)

    # Pre-transpose weights so the kernel never transposes.
    kernel_args = [x_flat]
    for (w_ih, w_hh, b) in params["lstm"]:
        kernel_args += [w_ih.T.astype(jnp.float32),        # (Din, 4H)
                        w_hh.T.astype(jnp.float32),        # (H,   4H)
                        b.astype(jnp.float32)]             # (1,   4H)
    fc_w_p = jnp.zeros((H, C_pad), jnp.float32).at[:, :C].set(fc_w.T)
    fc_b_p = jnp.zeros((1, C_pad), jnp.float32).at[:, :C].set(fc_b)
    kernel_args += [fc_w_p, fc_b_p]

    kernel = _make_fused_kernel(num_layers, T, B, H)
    out_pad = pl.pallas_call(
        kernel,
        out_shape=jax.ShapeDtypeStruct((B, C_pad), jnp.float32),
        # No grid: everything (x, all weights, logits) lives in VMEM for the whole
        # call; total footprint here is well under 1 MiB.
    )(*kernel_args)

    out = out_pad[:, :C]
    return out, out


# ------------------------------ Pure-JAX reference ----------------------------
def _reference_forward(params, x):
    B = x.shape[0]
    h_seq = jnp.transpose(x.astype(jnp.float32), (1, 0, 2))
    for (w_ih, w_hh, b) in params["lstm"]:
        H = w_hh.shape[1]
        h = jnp.zeros((B, H), jnp.float32)
        c = jnp.zeros((B, H), jnp.float32)
        outs = []
        for t in range(h_seq.shape[0]):
            gates = h_seq[t] @ w_ih.T + h @ w_hh.T + b
            i_g = jax.nn.sigmoid(gates[:, 0 * H:1 * H])
            f_g = jax.nn.sigmoid(gates[:, 1 * H:2 * H])
            g_g = jnp.tanh(gates[:, 2 * H:3 * H])
            o_g = jax.nn.sigmoid(gates[:, 3 * H:4 * H])
            c = f_g * c + i_g * g_g
            h = o_g * jnp.tanh(c)
            outs.append(h)
        h_seq = jnp.stack(outs, axis=0)
    fc_w, fc_b = params["fc"]
    return h_seq[-1] @ fc_w.T + fc_b


if __name__ == "__main__":
    # Small shapes consistent with the module's forward.
    batch, seq_len, input_size = 2, 8, 16
    hidden_size, num_layers, num_classes = 32, 2, 10

    key = jax.random.PRNGKey(0)
    key, pkey, xkey = jax.random.split(key, 3)
    params = init_params(pkey, input_size, hidden_size, num_layers, num_classes)
    x = jax.random.normal(xkey, (batch, seq_len, input_size), jnp.float32)

    fwd = jax.jit(lstm_classifier_forward)
    out, out2 = fwd(params, x)
    jax.block_until_ready(out)

    ref = _reference_forward(params, x)
    assert out.shape == (batch, num_classes)
    assert jnp.allclose(out, ref, atol=1e-3, rtol=1e-3), "mismatch vs reference"
    assert jnp.array_equal(out, out2)

    print("KERNEL_OK")
</pallas_src>

<mosaic_0001>
module attributes {stable_mosaic.version = 11 : i64} {
  func.func @kernel(%arg0: memref<16x16xf32, #tpu.memory_space<vmem>>, %arg1: memref<16x128xf32, #tpu.memory_space<vmem>>, %arg2: memref<32x128xf32, #tpu.memory_space<vmem>>, %arg3: memref<1x128xf32, #tpu.memory_space<vmem>>, %arg4: memref<32x128xf32, #tpu.memory_space<vmem>>, %arg5: memref<32x128xf32, #tpu.memory_space<vmem>>, %arg6: memref<1x128xf32, #tpu.memory_space<vmem>>, %arg7: memref<32x128xf32, #tpu.memory_space<vmem>>, %arg8: memref<1x128xf32, #tpu.memory_space<vmem>>, %arg9: memref<2x128xf32, #tpu.memory_space<vmem>>) attributes {dimension_semantics = [], scalar_prefetch = 0 : i64, scratch_operands = 0 : i64, tpu.core_type = #tpu.core_type<tc>} {
    %c0 = arith.constant 0 : index
    %c0_0 = arith.constant 0 : index
    %0 = vector.load %arg0[%c0, %c0_0] : memref<16x16xf32, #tpu.memory_space<vmem>>, vector<16x16xf32>
    %c0_1 = arith.constant 0 : index
    %c0_2 = arith.constant 0 : index
    %1 = vector.load %arg1[%c0_1, %c0_2] : memref<16x128xf32, #tpu.memory_space<vmem>>, vector<16x128xf32>
    %c0_3 = arith.constant 0 : index
    %c0_4 = arith.constant 0 : index
    %2 = vector.load %arg2[%c0_3, %c0_4] : memref<32x128xf32, #tpu.memory_space<vmem>>, vector<32x128xf32>
    %c0_5 = arith.constant 0 : index
    %c0_6 = arith.constant 0 : index
    %3 = vector.load %arg3[%c0_5, %c0_6] : memref<1x128xf32, #tpu.memory_space<vmem>>, vector<1x128xf32>
    %cst = arith.constant dense<0.000000e+00> : vector<16x128xf32>
    %4 = tpu.matmul %0, %1, %cst {dimension_numbers = #tpu.dot_dimension_numbers<[1], [0], [0], [1], [0, 0, 1, 1], [], []>} : vector<16x16xf32>, vector<16x128xf32>, vector<16x128xf32> -> vector<16x128xf32>
    %5 = vector.broadcast %3 : vector<1x128xf32> to vector<16x128xf32>
    %6 = arith.addf %4, %5 : vector<16x128xf32>
    %cst_7 = arith.constant 0.000000e+00 : f32
    %7 = vector.broadcast %cst_7 : f32 to vector<2x32xf32>
    %cst_8 = arith.constant 0.000000e+00 : f32
    %8 = vector.broadcast %cst_8 : f32 to vector<2x32xf32>
    %9 = vector.extract_strided_slice %6 {offsets = [0, 0], sizes = [2, 128], strides = [1, 1]} : vector<16x128xf32> to vector<2x128xf32>
    %cst_9 = arith.constant dense<0.000000e+00> : vector<2x128xf32>
    %10 = tpu.matmul %7, %2, %cst_9 {dimension_numbers = #tpu.dot_dimension_numbers<[1], [0], [0], [1], [0, 0, 1, 1], [], []>} : vector<2x32xf32>, vector<32x128xf32>, vector<2x128xf32> -> vector<2x128xf32>
    %11 = arith.addf %9, %10 : vector<2x128xf32>
    %12 = vector.extract_strided_slice %11 {offsets = [0, 0], sizes = [2, 32], strides = [1, 1]} : vector<2x128xf32> to vector<2x32xf32>
    %13 = arith.negf %12 : vector<2x32xf32>
    %14 = math.exp %13 : vector<2x32xf32>
    %cst_10 = arith.constant 1.000000e+00 : f32
    %15 = vector.broadcast %cst_10 : f32 to vector<2x32xf32>
    %16 = arith.addf %15, %14 : vector<2x32xf32>
    %17 = arith.divf %15, %16 : vector<2x32xf32>
    %18 = vector.extract_strided_slice %11 {offsets = [0, 32], sizes = [2, 32], strides = [1, 1]} : vector<2x128xf32> to vector<2x32xf32>
    %19 = arith.negf %18 : vector<2x32xf32>
    %20 = math.exp %19 : vector<2x32xf32>
    %cst_11 = arith.constant 1.000000e+00 : f32
    %21 = vector.broadcast %cst_11 : f32 to vector<2x32xf32>
    %22 = arith.addf %21, %20 : vector<2x32xf32>
    %23 = arith.divf %21, %22 : vector<2x32xf32>
    %24 = vector.extract_strided_slice %11 {offsets = [0, 64], sizes = [2, 32], strides = [1, 1]} : vector<2x128xf32> to vector<2x32xf32>
    %25 = math.tanh %24 : vector<2x32xf32>
    %26 = vector.extract_strided_slice %11 {offsets = [0, 96], sizes = [2, 32], strides = [1, 1]} : vector<2x128xf32> to vector<2x32xf32>
    %27 = arith.negf %26 : vector<2x32xf32>
    %28 = math.exp %27 : vector<2x32xf32>
    %cst_12 = arith.constant 1.000000e+00 : f32
    %29 = vector.broadcast %cst_12 : f32 to vector<2x32xf32>
    %30 = arith.addf %29, %28 : vector<2x32xf32>
    %31 = arith.divf %29, %30 : vector<2x32xf32>
    %32 = arith.mulf %23, %8 : vector<2x32xf32>
    %33 = arith.mulf %17, %25 : vector<2x32xf32>
    %34 = arith.addf %32, %33 : vector<2x32xf32>
    %35 = math.tanh %34 : vector<2x32xf32>
    %36 = arith.mulf %31, %35 : vector<2x32xf32>
    %37 = vector.extract_strided_slice %6 {offsets = [2, 0], sizes = [2, 128], strides = [1, 1]} : vector<16x128xf32> to vector<2x128xf32>
    %cst_13 = arith.constant dense<0.000000e+00> : vector<2x128xf32>
    %38 = tpu.matmul %36, %2, %cst_13 {dimension_numbers = #tpu.dot_dimension_numbers<[1], [0], [0], [1], [0, 0, 1, 1], [], []>} : vector<2x32xf32>, vector<32x128xf32>, vector<2x128xf32> -> vector<2x128xf32>
    %39 = arith.addf %37, %38 : vector<2x128xf32>
    %40 = vector.extract_strided_slice %39 {offsets = [0, 0], sizes = [2, 32], strides = [1, 1]} : vector<2x128xf32> to vector<2x32xf32>
    %41 = arith.negf %40 : vector<2x32xf32>
    %42 = math.exp %41 : vector<2x32xf32>
    %cst_14 = arith.constant 1.000000e+00 : f32
    %43 = vector.broadcast %cst_14 : f32 to vector<2x32xf32>
    %44 = arith.addf %43, %42 : vector<2x32xf32>
    %45 = arith.divf %43, %44 : vector<2x32xf32>
    %46 = vector.extract_strided_slice %39 {offsets = [0, 32], sizes = [2, 32], strides = [1, 1]} : vector<2x128xf32> to vector<2x32xf32>
    %47 = arith.negf %46 : vector<2x32xf32>
    %48 = math.exp %47 : vector<2x32xf32>
    %cst_15 = arith.constant 1.000000e+00 : f32
    %49 = vector.broadcast %cst_15 : f32 to vector<2x32xf32>
    %50 = arith.addf %49, %48 : vector<2x32xf32>
    %51 = arith.divf %49, %50 : vector<2x32xf32>
    %52 = vector.extract_strided_slice %39 {offsets = [0, 64], sizes = [2, 32], strides = [1, 1]} : vector<2x128xf32> to vector<2x32xf32>
    %53 = math.tanh %52 : vector<2x32xf32>
    %54 = vector.extract_strided_slice %39 {offsets = [0, 96], sizes = [2, 32], strides = [1, 1]} : vector<2x128xf32> to vector<2x32xf32>
    %55 = arith.negf %54 : vector<2x32xf32>
    %56 = math.exp %55 : vector<2x32xf32>
    %cst_16 = arith.constant 1.000000e+00 : f32
    %57 = vector.broadcast %cst_16 : f32 to vector<2x32xf32>
    %58 = arith.addf %57, %56 : vector<2x32xf32>
    %59 = arith.divf %57, %58 : vector<2x32xf32>
    %60 = arith.mulf %51, %34 : vector<2x32xf32>
    %61 = arith.mulf %45, %53 : vector<2x32xf32>
    %62 = arith.addf %60, %61 : vector<2x32xf32>
    %63 = math.tanh %62 : vector<2x32xf32>
    %64 = arith.mulf %59, %63 : vector<2x32xf32>
    %65 = vector.extract_strided_slice %6 {offsets = [4, 0], sizes = [2, 128], strides = [1, 1]} : vector<16x128xf32> to vector<2x128xf32>
    %cst_17 = arith.constant dense<0.000000e+00> : vector<2x128xf32>
    %66 = tpu.matmul %64, %2, %cst_17 {dimension_numbers = #tpu.dot_dimension_numbers<[1], [0], [0], [1], [0, 0, 1, 1], [], []>} : vector<2x32xf32>, vector<32x128xf32>, vector<2x128xf32> -> vector<2x128xf32>
    %67 = arith.addf %65, %66 : vector<2x128xf32>
    %68 = vector.extract_strided_slice %67 {offsets = [0, 0], sizes = [2, 32], strides = [1, 1]} : vector<2x128xf32> to vector<2x32xf32>
    %69 = arith.negf %68 : vector<2x32xf32>
    %70 = math.exp %69 : vector<2x32xf32>
    %cst_18 = arith.constant 1.000000e+00 : f32
    %71 = vector.broadcast %cst_18 : f32 to vector<2x32xf32>
    %72 = arith.addf %71, %70 : vector<2x32xf32>
    %73 = arith.divf %71, %72 : vector<2x32xf32>
    %74 = vector.extract_strided_slice %67 {offsets = [0, 32], sizes = [2, 32], strides = [1, 1]} : vector<2x128xf32> to vector<2x32xf32>
    %75 = arith.negf %74 : vector<2x32xf32>
    %76 = math.exp %75 : vector<2x32xf32>
    %cst_19 = arith.constant 1.000000e+00 : f32
    %77 = vector.broadcast %cst_19 : f32 to vector<2x32xf32>
    %78 = arith.addf %77, %76 : vector<2x32xf32>
    %79 = arith.divf %77, %78 : vector<2x32xf32>
    %80 = vector.extract_strided_slice %67 {offsets = [0, 64], sizes = [2, 32], strides = [1, 1]} : vector<2x128xf32> to vector<2x32xf32>
    %81 = math.tanh %80 : vector<2x32xf32>
    %82 = vector.extract_strided_slice %67 {offsets = [0, 96], sizes = [2, 32], strides = [1, 1]} : vector<2x128xf32> to vector<2x32xf32>
    %83 = arith.negf %82 : vector<2x32xf32>
    %84 = math.exp %83 : vector<2x32xf32>
    %cst_20 = arith.constant 1.000000e+00 : f32
    %85 = vector.broadcast %cst_20 : f32 to vector<2x32xf32>
    %86 = arith.addf %85, %84 : vector<2x32xf32>
    %87 = arith.divf %85, %86 : vector<2x32xf32>
    %88 = arith.mulf %79, %62 : vector<2x32xf32>
    %89 = arith.mulf %73, %81 : vector<2x32xf32>
    %90 = arith.addf %88, %89 : vector<2x32xf32>
    %91 = math.tanh %90 : vector<2x32xf32>
    %92 = arith.mulf %87, %91 : vector<2x32xf32>
    %93 = vector.extract_strided_slice %6 {offsets = [6, 0], sizes = [2, 128], strides = [1, 1]} : vector<16x128xf32> to vector<2x128xf32>
    %cst_21 = arith.constant dense<0.000000e+00> : vector<2x128xf32>
    %94 = tpu.matmul %92, %2, %cst_21 {dimension_numbers = #tpu.dot_dimension_numbers<[1], [0], [0], [1], [0, 0, 1, 1], [], []>} : vector<2x32xf32>, vector<32x128xf32>, vector<2x128xf32> -> vector<2x128xf32>
    %95 = arith.addf %93, %94 : vector<2x128xf32>
    %96 = vector.extract_strided_slice %95 {offsets = [0, 0], sizes = [2, 32], strides = [1, 1]} : vector<2x128xf32> to vector<2x32xf32>
    %97 = arith.negf %96 : vector<2x32xf32>
    %98 = math.exp %97 : vector<2x32xf32>
    %cst_22 = arith.constant 1.000000e+00 : f32
    %99 = vector.broadcast %cst_22 : f32 to vector<2x32xf32>
    %100 = arith.addf %99, %98 : vector<2x32xf32>
    %101 = arith.divf %99, %100 : vector<2x32xf32>
    %102 = vector.extract_strided_slice %95 {offsets = [0, 32], sizes = [2, 32], strides = [1, 1]} : vector<2x128xf32> to vector<2x32xf32>
    %103 = arith.negf %102 : vector<2x32xf32>
    %104 = math.exp %103 : vector<2x32xf32>
    %cst_23 = arith.constant 1.000000e+00 : f32
    %105 = vector.broadcast %cst_23 : f32 to vector<2x32xf32>
    %106 = arith.addf %105, %104 : vector<2x32xf32>
    %107 = arith.divf %105, %106 : vector<2x32xf32>
    %108 = vector.extract_strided_slice %95 {offsets = [0, 64], sizes = [2, 32], strides = [1, 1]} : vector<2x128xf32> to vector<2x32xf32>
    %109 = math.tanh %108 : vector<2x32xf32>
    %110 = vector.extract_strided_slice %95 {offsets = [0, 96], sizes = [2, 32], strides = [1, 1]} : vector<2x128xf32> to vector<2x32xf32>
    %111 = arith.negf %110 : vector<2x32xf32>
    %112 = math.exp %111 : vector<2x32xf32>
    %cst_24 = arith.constant 1.000000e+00 : f32
    %113 = vector.broadcast %cst_24 : f32 to vector<2x32xf32>
    %114 = arith.addf %113, %112 : vector<2x32xf32>
    %115 = arith.divf %113, %114 : vector<2x32xf32>
    %116 = arith.mulf %107, %90 : vector<2x32xf32>
    %117 = arith.mulf %101, %109 : vector<2x32xf32>
    %118 = arith.addf %116, %117 : vector<2x32xf32>
    %119 = math.tanh %118 : vector<2x32xf32>
    %120 = arith.mulf %115, %119 : vector<2x32xf32>
    %121 = vector.extract_strided_slice %6 {offsets = [8, 0], sizes = [2, 128], strides = [1, 1]} : vector<16x128xf32> to vector<2x128xf32>
    %cst_25 = arith.constant dense<0.000000e+00> : vector<2x128xf32>
    %122 = tpu.matmul %120, %2, %cst_25 {dimension_numbers = #tpu.dot_dimension_numbers<[1], [0], [0], [1], [0, 0, 1, 1], [], []>} : vector<2x32xf32>, vector<32x128xf32>, vector<2x128xf32> -> vector<2x128xf32>
    %123 = arith.addf %121, %122 : vector<2x128xf32>
    %124 = vector.extract_strided_slice %123 {offsets = [0, 0], sizes = [2, 32], strides = [1, 1]} : vector<2x128xf32> to vector<2x32xf32>
    %125 = arith.negf %124 : vector<2x32xf32>
    %126 = math.exp %125 : vector<2x32xf32>
    %cst_26 = arith.constant 1.000000e+00 : f32
    %127 = vector.broadcast %cst_26 : f32 to vector<2x32xf32>
    %128 = arith.addf %127, %126 : vector<2x32xf32>
    %129 = arith.divf %127, %128 : vector<2x32xf32>
    %130 = vector.extract_strided_slice %123 {offsets = [0, 32], sizes = [2, 32], strides = [1, 1]} : vector<2x128xf32> to vector<2x32xf32>
    %131 = arith.negf %130 : vector<2x32xf32>
    %132 = math.exp %131 : vector<2x32xf32>
    %cst_27 = arith.constant 1.000000e+00 : f32
    %133 = vector.broadcast %cst_27 : f32 to vector<2x32xf32>
    %134 = arith.addf %133, %132 : vector<2x32xf32>
    %135 = arith.divf %133, %134 : vector<2x32xf32>
    %136 = vector.extract_strided_slice %123 {offsets = [0, 64], sizes = [2, 32], strides = [1, 1]} : vector<2x128xf32> to vector<2x32xf32>
    %137 = math.tanh %136 : vector<2x32xf32>
    %138 = vector.extract_strided_slice %123 {offsets = [0, 96], sizes = [2, 32], strides = [1, 1]} : vector<2x128xf32> to vector<2x32xf32>
    %139 = arith.negf %138 : vector<2x32xf32>
    %140 = math.exp %139 : vector<2x32xf32>
    %cst_28 = arith.constant 1.000000e+00 : f32
    %141 = vector.broadcast %cst_28 : f32 to vector<2x32xf32>
    %142 = arith.addf %141, %140 : vector<2x32xf32>
    %143 = arith.divf %141, %142 : vector<2x32xf32>
    %144 = arith.mulf %135, %118 : vector<2x32xf32>
    %145 = arith.mulf %129, %137 : vector<2x32xf32>
    %146 = arith.addf %144, %145 : vector<2x32xf32>
    %147 = math.tanh %146 : vector<2x32xf32>
    %148 = arith.mulf %143, %147 : vector<2x32xf32>
    %149 = vector.extract_strided_slice %6 {offsets = [10, 0], sizes = [2, 128], strides = [1, 1]} : vector<16x128xf32> to vector<2x128xf32>
    %cst_29 = arith.constant dense<0.000000e+00> : vector<2x128xf32>
    %150 = tpu.matmul %148, %2, %cst_29 {dimension_numbers = #tpu.dot_dimension_numbers<[1], [0], [0], [1], [0, 0, 1, 1], [], []>} : vector<2x32xf32>, vector<32x128xf32>, vector<2x128xf32> -> vector<2x128xf32>
    %151 = arith.addf %149, %150 : vector<2x128xf32>
    %152 = vector.extract_strided_slice %151 {offsets = [0, 0], sizes = [2, 32], strides = [1, 1]} : vector<2x128xf32> to vector<2x32xf32>
    %153 = arith.negf %152 : vector<2x32xf32>
    %154 = math.exp %153 : vector<2x32xf32>
    %cst_30 = arith.constant 1.000000e+00 : f32
    %155 = vector.broadcast %cst_30 : f32 to vector<2x32xf32>
    %156 = arith.addf %155, %154 : vector<2x32xf32>
    %157 = arith.divf %155, %156 : vector<2x32xf32>
    %158 = vector.extract_strided_slice %151 {offsets = [0, 32], sizes = [2, 32], strides = [1, 1]} : vector<2x128xf32> to vector<2x32xf32>
    %159 = arith.negf %158 : vector<2x32xf32>
    %160 = math.exp %159 : vector<2x32xf32>
    %cst_31 = arith.constant 1.000000e+00 : f32
    %161 = vector.broadcast %cst_31 : f32 to vector<2x32xf32>
    %162 = arith.addf %161, %160 : vector<2x32xf32>
    %163 = arith.divf %161, %162 : vector<2x32xf32>
    %164 = vector.extract_strided_slice %151 {offsets = [0, 64], sizes = [2, 32], strides = [1, 1]} : vector<2x128xf32> to vector<2x32xf32>
    %165 = math.tanh %164 : vector<2x32xf32>
    %166 = vector.extract_strided_slice %151 {offsets = [0, 96], sizes = [2, 32], strides = [1, 1]} : vector<2x128xf32> to vector<2x32xf32>
    %167 = arith.negf %166 : vector<2x32xf32>
    %168 = math.exp %167 : vector<2x32xf32>
    %cst_32 = arith.constant 1.000000e+00 : f32
    %169 = vector.broadcast %cst_32 : f32 to vector<2x32xf32>
    %170 = arith.addf %169, %168 : vector<2x32xf32>
    %171 = arith.divf %169, %170 : vector<2x32xf32>
    %172 = arith.mulf %163, %146 : vector<2x32xf32>
    %173 = arith.mulf %157, %165 : vector<2x32xf32>
    %174 = arith.addf %172, %173 : vector<2x32xf32>
    %175 = math.tanh %174 : vector<2x32xf32>
    %176 = arith.mulf %171, %175 : vector<2x32xf32>
    %177 = vector.extract_strided_slice %6 {offsets = [12, 0], sizes = [2, 128], strides = [1, 1]} : vector<16x128xf32> to vector<2x128xf32>
    %cst_33 = arith.constant dense<0.000000e+00> : vector<2x128xf32>
    %178 = tpu.matmul %176, %2, %cst_33 {dimension_numbers = #tpu.dot_dimension_numbers<[1], [0], [0], [1], [0, 0, 1, 1], [], []>} : vector<2x32xf32>, vector<32x128xf32>, vector<2x128xf32> -> vector<2x128xf32>
    %179 = arith.addf %177, %178 : vector<2x128xf32>
    %180 = vector.extract_strided_slice %179 {offsets = [0, 0], sizes = [2, 32], strides = [1, 1]} : vector<2x128xf32> to vector<2x32xf32>
    %181 = arith.negf %180 : vector<2x32xf32>
    %182 = math.exp %181 : vector<2x32xf32>
    %cst_34 = arith.constant 1.000000e+00 : f32
    %183 = vector.broadcast %cst_34 : f32 to vector<2x32xf32>
    %184 = arith.addf %183, %182 : vector<2x32xf32>
    %185 = arith.divf %183, %184 : vector<2x32xf32>
    %186 = vector.extract_strided_slice %179 {offsets = [0, 32], sizes = [2, 32], strides = [1, 1]} : vector<2x128xf32> to vector<2x32xf32>
    %187 = arith.negf %186 : vector<2x32xf32>
    %188 = math.exp %187 : vector<2x32xf32>
    %cst_35 = arith.constant 1.000000e+00 : f32
    %189 = vector.broadcast %cst_35 : f32 to vector<2x32xf32>
    %190 = arith.addf %189, %188 : vector<2x32xf32>
    %191 = arith.divf %189, %190 : vector<2x32xf32>
    %192 = vector.extract_strided_slice %179 {offsets = [0, 64], sizes = [2, 32], strides = [1, 1]} : vector<2x128xf32> to vector<2x32xf32>
    %193 = math.tanh %192 : vector<2x32xf32>
    %194 = vector.extract_strided_slice %179 {offsets = [0, 96], sizes = [2, 32], strides = [1, 1]} : vector<2x128xf32> to vector<2x32xf32>
    %195 = arith.negf %194 : vector<2x32xf32>
    %196 = math.exp %195 : vector<2x32xf32>
    %cst_36 = arith.constant 1.000000e+00 : f32
    %197 = vector.broadcast %cst_36 : f32 to vector<2x32xf32>
    %198 = arith.addf %197, %196 : vector<2x32xf32>
    %199 = arith.divf %197, %198 : vector<2x32xf32>
    %200 = arith.mulf %191, %174 : vector<2x32xf32>
    %201 = arith.mulf %185, %193 : vector<2x32xf32>
    %202 = arith.addf %200, %201 : vector<2x32xf32>
    %203 = math.tanh %202 : vector<2x32xf32>
    %204 = arith.mulf %199, %203 : vector<2x32xf32>
    %205 = vector.extract_strided_slice %6 {offsets = [14, 0], sizes = [2, 128], strides = [1, 1]} : vector<16x128xf32> to vector<2x128xf32>
    %cst_37 = arith.constant dense<0.000000e+00> : vector<2x128xf32>
    %206 = tpu.matmul %204, %2, %cst_37 {dimension_numbers = #tpu.dot_dimension_numbers<[1], [0], [0], [1], [0, 0, 1, 1], [], []>} : vector<2x32xf32>, vector<32x128xf32>, vector<2x128xf32> -> vector<2x128xf32>
    %207 = arith.addf %205, %206 : vector<2x128xf32>
    %208 = vector.extract_strided_slice %207 {offsets = [0, 0], sizes = [2, 32], strides = [1, 1]} : vector<2x128xf32> to vector<2x32xf32>
    %209 = arith.negf %208 : vector<2x32xf32>
    %210 = math.exp %209 : vector<2x32xf32>
    %cst_38 = arith.constant 1.000000e+00 : f32
    %211 = vector.broadcast %cst_38 : f32 to vector<2x32xf32>
    %212 = arith.addf %211, %210 : vector<2x32xf32>
    %213 = arith.divf %211, %212 : vector<2x32xf32>
    %214 = vector.extract_strided_slice %207 {offsets = [0, 32], sizes = [2, 32], strides = [1, 1]} : vector<2x128xf32> to vector<2x32xf32>
    %215 = arith.negf %214 : vector<2x32xf32>
    %216 = math.exp %215 : vector<2x32xf32>
    %cst_39 = arith.constant 1.000000e+00 : f32
    %217 = vector.broadcast %cst_39 : f32 to vector<2x32xf32>
    %218 = arith.addf %217, %216 : vector<2x32xf32>
    %219 = arith.divf %217, %218 : vector<2x32xf32>
    %220 = vector.extract_strided_slice %207 {offsets = [0, 64], sizes = [2, 32], strides = [1, 1]} : vector<2x128xf32> to vector<2x32xf32>
    %221 = math.tanh %220 : vector<2x32xf32>
    %222 = vector.extract_strided_slice %207 {offsets = [0, 96], sizes = [2, 32], strides = [1, 1]} : vector<2x128xf32> to vector<2x32xf32>
    %223 = arith.negf %222 : vector<2x32xf32>
    %224 = math.exp %223 : vector<2x32xf32>
    %cst_40 = arith.constant 1.000000e+00 : f32
    %225 = vector.broadcast %cst_40 : f32 to vector<2x32xf32>
    %226 = arith.addf %225, %224 : vector<2x32xf32>
    %227 = arith.divf %225, %226 : vector<2x32xf32>
    %228 = arith.mulf %219, %202 : vector<2x32xf32>
    %229 = arith.mulf %213, %221 : vector<2x32xf32>
    %230 = arith.addf %228, %229 : vector<2x32xf32>
    %231 = math.tanh %230 : vector<2x32xf32>
    %232 = arith.mulf %227, %231 : vector<2x32xf32>
    %233 = tpu.concatenate %36, %64, %92, %120, %148, %176, %204, %232 in 0 : vector<2x32xf32>, vector<2x32xf32>, vector<2x32xf32>, vector<2x32xf32>, vector<2x32xf32>, vector<2x32xf32>, vector<2x32xf32>, vector<2x32xf32> -> vector<16x32xf32>
    %c0_41 = arith.constant 0 : index
    %c0_42 = arith.constant 0 : index
    %234 = vector.load %arg4[%c0_41, %c0_42] : memref<32x128xf32, #tpu.memory_space<vmem>>, vector<32x128xf32>
    %c0_43 = arith.constant 0 : index
    %c0_44 = arith.constant 0 : index
    %235 = vector.load %arg5[%c0_43, %c0_44] : memref<32x128xf32, #tpu.memory_space<vmem>>, vector<32x128xf32>
    %c0_45 = arith.constant 0 : index
    %c0_46 = arith.constant 0 : index
    %236 = vector.load %arg6[%c0_45, %c0_46] : memref<1x128xf32, #tpu.memory_space<vmem>>, vector<1x128xf32>
    %cst_47 = arith.constant dense<0.000000e+00> : vector<16x128xf32>
    %237 = tpu.matmul %233, %234, %cst_47 {dimension_numbers = #tpu.dot_dimension_numbers<[1], [0], [0], [1], [0, 0, 1, 1], [], []>} : vector<16x32xf32>, vector<32x128xf32>, vector<16x128xf32> -> vector<16x128xf32>
    %238 = vector.broadcast %236 : vector<1x128xf32> to vector<16x128xf32>
    %239 = arith.addf %237, %238 : vector<16x128xf32>
    %cst_48 = arith.constant 0.000000e+00 : f32
    %240 = vector.broadcast %cst_48 : f32 to vector<2x32xf32>
    %cst_49 = arith.constant 0.000000e+00 : f32
    %241 = vector.broadcast %cst_49 : f32 to vector<2x32xf32>
    %242 = vector.extract_strided_slice %239 {offsets = [0, 0], sizes = [2, 128], strides = [1, 1]} : vector<16x128xf32> to vector<2x128xf32>
    %cst_50 = arith.constant dense<0.000000e+00> : vector<2x128xf32>
    %243 = tpu.matmul %240, %235, %cst_50 {dimension_numbers = #tpu.dot_dimension_numbers<[1], [0], [0], [1], [0, 0, 1, 1], [], []>} : vector<2x32xf32>, vector<32x128xf32>, vector<2x128xf32> -> vector<2x128xf32>
    %244 = arith.addf %242, %243 : vector<2x128xf32>
    %245 = vector.extract_strided_slice %244 {offsets = [0, 0], sizes = [2, 32], strides = [1, 1]} : vector<2x128xf32> to vector<2x32xf32>
    %246 = arith.negf %245 : vector<2x32xf32>
    %247 = math.exp %246 : vector<2x32xf32>
    %cst_51 = arith.constant 1.000000e+00 : f32
    %248 = vector.broadcast %cst_51 : f32 to vector<2x32xf32>
    %249 = arith.addf %248, %247 : vector<2x32xf32>
    %250 = arith.divf %248, %249 : vector<2x32xf32>
    %251 = vector.extract_strided_slice %244 {offsets = [0, 32], sizes = [2, 32], strides = [1, 1]} : vector<2x128xf32> to vector<2x32xf32>
    %252 = arith.negf %251 : vector<2x32xf32>
    %253 = math.exp %252 : vector<2x32xf32>
    %cst_52 = arith.constant 1.000000e+00 : f32
    %254 = vector.broadcast %cst_52 : f32 to vector<2x32xf32>
    %255 = arith.addf %254, %253 : vector<2x32xf32>
    %256 = arith.divf %254, %255 : vector<2x32xf32>
    %257 = vector.extract_strided_slice %244 {offsets = [0, 64], sizes = [2, 32], strides = [1, 1]} : vector<2x128xf32> to vector<2x32xf32>
    %258 = math.tanh %257 : vector<2x32xf32>
    %259 = vector.extract_strided_slice %244 {offsets = [0, 96], sizes = [2, 32], strides = [1, 1]} : vector<2x128xf32> to vector<2x32xf32>
    %260 = arith.negf %259 : vector<2x32xf32>
    %261 = math.exp %260 : vector<2x32xf32>
    %cst_53 = arith.constant 1.000000e+00 : f32
    %262 = vector.broadcast %cst_53 : f32 to vector<2x32xf32>
    %263 = arith.addf %262, %261 : vector<2x32xf32>
    %264 = arith.divf %262, %263 : vector<2x32xf32>
    %265 = arith.mulf %256, %241 : vector<2x32xf32>
    %266 = arith.mulf %250, %258 : vector<2x32xf32>
    %267 = arith.addf %265, %266 : vector<2x32xf32>
    %268 = math.tanh %267 : vector<2x32xf32>
    %269 = arith.mulf %264, %268 : vector<2x32xf32>
    %270 = vector.extract_strided_slice %239 {offsets = [2, 0], sizes = [2, 128], strides = [1, 1]} : vector<16x128xf32> to vector<2x128xf32>
    %cst_54 = arith.constant dense<0.000000e+00> : vector<2x128xf32>
    %271 = tpu.matmul %269, %235, %cst_54 {dimension_numbers = #tpu.dot_dimension_numbers<[1], [0], [0], [1], [0, 0, 1, 1], [], []>} : vector<2x32xf32>, vector<32x128xf32>, vector<2x128xf32> -> vector<2x128xf32>
    %272 = arith.addf %270, %271 : vector<2x128xf32>
    %273 = vector.extract_strided_slice %272 {offsets = [0, 0], sizes = [2, 32], strides = [1, 1]} : vector<2x128xf32> to vector<2x32xf32>
    %274 = arith.negf %273 : vector<2x32xf32>
    %275 = math.exp %274 : vector<2x32xf32>
    %cst_55 = arith.constant 1.000000e+00 : f32
    %276 = vector.broadcast %cst_55 : f32 to vector<2x32xf32>
    %277 = arith.addf %276, %275 : vector<2x32xf32>
    %278 = arith.divf %276, %277 : vector<2x32xf32>
    %279 = vector.extract_strided_slice %272 {offsets = [0, 32], sizes = [2, 32], strides = [1, 1]} : vector<2x128xf32> to vector<2x32xf32>
    %280 = arith.negf %279 : vector<2x32xf32>
    %281 = math.exp %280 : vector<2x32xf32>
    %cst_56 = arith.constant 1.000000e+00 : f32
    %282 = vector.broadcast %cst_56 : f32 to vector<2x32xf32>
    %283 = arith.addf %282, %281 : vector<2x32xf32>
    %284 = arith.divf %282, %283 : vector<2x32xf32>
    %285 = vector.extract_strided_slice %272 {offsets = [0, 64], sizes = [2, 32], strides = [1, 1]} : vector<2x128xf32> to vector<2x32xf32>
    %286 = math.tanh %285 : vector<2x32xf32>
    %287 = vector.extract_strided_slice %272 {offsets = [0, 96], sizes = [2, 32], strides = [1, 1]} : vector<2x128xf32> to vector<2x32xf32>
    %288 = arith.negf %287 : vector<2x32xf32>
    %289 = math.exp %288 : vector<2x32xf32>
    %cst_57 = arith.constant 1.000000e+00 : f32
    %290 = vector.broadcast %cst_57 : f32 to vector<2x32xf32>
    %291 = arith.addf %290, %289 : vector<2x32xf32>
    %292 = arith.divf %290, %291 : vector<2x32xf32>
    %293 = arith.mulf %284, %267 : vector<2x32xf32>
    %294 = arith.mulf %278, %286 : vector<2x32xf32>
    %295 = arith.addf %293, %294 : vector<2x32xf32>
    %296 = math.tanh %295 : vector<2x32xf32>
    %297 = arith.mulf %292, %296 : vector<2x32xf32>
    %298 = vector.extract_strided_slice %239 {offsets = [4, 0], sizes = [2, 128], strides = [1, 1]} : vector<16x128xf32> to vector<2x128xf32>
    %cst_58 = arith.constant dense<0.000000e+00> : vector<2x128xf32>
    %299 = tpu.matmul %297, %235, %cst_58 {dimension_numbers = #tpu.dot_dimension_numbers<[1], [0], [0], [1], [0, 0, 1, 1], [], []>} : vector<2x32xf32>, vector<32x128xf32>, vector<2x128xf32> -> vector<2x128xf32>
    %300 = arith.addf %298, %299 : vector<2x128xf32>
    %301 = vector.extract_strided_slice %300 {offsets = [0, 0], sizes = [2, 32], strides = [1, 1]} : vector<2x128xf32> to vector<2x32xf32>
    %302 = arith.negf %301 : vector<2x32xf32>
    %303 = math.exp %302 : vector<2x32xf32>
    %cst_59 = arith.constant 1.000000e+00 : f32
    %304 = vector.broadcast %cst_59 : f32 to vector<2x32xf32>
    %305 = arith.addf %304, %303 : vector<2x32xf32>
    %306 = arith.divf %304, %305 : vector<2x32xf32>
    %307 = vector.extract_strided_slice %300 {offsets = [0, 32], sizes = [2, 32], strides = [1, 1]} : vector<2x128xf32> to vector<2x32xf32>
    %308 = arith.negf %307 : vector<2x32xf32>
    %309 = math.exp %308 : vector<2x32xf32>
    %cst_60 = arith.constant 1.000000e+00 : f32
    %310 = vector.broadcast %cst_60 : f32 to vector<2x32xf32>
    %311 = arith.addf %310, %309 : vector<2x32xf32>
    %312 = arith.divf %310, %311 : vector<2x32xf32>
    %313 = vector.extract_strided_slice %300 {offsets = [0, 64], sizes = [2, 32], strides = [1, 1]} : vector<2x128xf32> to vector<2x32xf32>
    %314 = math.tanh %313 : vector<2x32xf32>
    %315 = vector.extract_strided_slice %300 {offsets = [0, 96], sizes = [2, 32], strides = [1, 1]} : vector<2x128xf32> to vector<2x32xf32>
    %316 = arith.negf %315 : vector<2x32xf32>
    %317 = math.exp %316 : vector<2x32xf32>
    %cst_61 = arith.constant 1.000000e+00 : f32
    %318 = vector.broadcast %cst_61 : f32 to vector<2x32xf32>
    %319 = arith.addf %318, %317 : vector<2x32xf32>
    %320 = arith.divf %318, %319 : vector<2x32xf32>
    %321 = arith.mulf %312, %295 : vector<2x32xf32>
    %322 = arith.mulf %306, %314 : vector<2x32xf32>
    %323 = arith.addf %321, %322 : vector<2x32xf32>
    %324 = math.tanh %323 : vector<2x32xf32>
    %325 = arith.mulf %320, %324 : vector<2x32xf32>
    %326 = vector.extract_strided_slice %239 {offsets = [6, 0], sizes = [2, 128], strides = [1, 1]} : vector<16x128xf32> to vector<2x128xf32>
    %cst_62 = arith.constant dense<0.000000e+00> : vector<2x128xf32>
    %327 = tpu.matmul %325, %235, %cst_62 {dimension_numbers = #tpu.dot_dimension_numbers<[1], [0], [0], [1], [0, 0, 1, 1], [], []>} : vector<2x32xf32>, vector<32x128xf32>, vector<2x128xf32> -> vector<2x128xf32>
    %328 = arith.addf %326, %327 : vector<2x128xf32>
    %329 = vector.extract_strided_slice %328 {offsets = [0, 0], sizes = [2, 32], strides = [1, 1]} : vector<2x128xf32> to vector<2x32xf32>
    %330 = arith.negf %329 : vector<2x32xf32>
    %331 = math.exp %330 : vector<2x32xf32>
    %cst_63 = arith.constant 1.000000e+00 : f32
    %332 = vector.broadcast %cst_63 : f32 to vector<2x32xf32>
    %333 = arith.addf %332, %331 : vector<2x32xf32>
    %334 = arith.divf %332, %333 : vector<2x32xf32>
    %335 = vector.extract_strided_slice %328 {offsets = [0, 32], sizes = [2, 32], strides = [1, 1]} : vector<2x128xf32> to vector<2x32xf32>
    %336 = arith.negf %335 : vector<2x32xf32>
    %337 = math.exp %336 : vector<2x32xf32>
    %cst_64 = arith.constant 1.000000e+00 : f32
    %338 = vector.broadcast %cst_64 : f32 to vector<2x32xf32>
    %339 = arith.addf %338, %337 : vector<2x32xf32>
    %340 = arith.divf %338, %339 : vector<2x32xf32>
    %341 = vector.extract_strided_slice %328 {offsets = [0, 64], sizes = [2, 32], strides = [1, 1]} : vector<2x128xf32> to vector<2x32xf32>
    %342 = math.tanh %341 : vector<2x32xf32>
    %343 = vector.extract_strided_slice %328 {offsets = [0, 96], sizes = [2, 32], strides = [1, 1]} : vector<2x128xf32> to vector<2x32xf32>
    %344 = arith.negf %343 : vector<2x32xf32>
    %345 = math.exp %344 : vector<2x32xf32>
    %cst_65 = arith.constant 1.000000e+00 : f32
    %346 = vector.broadcast %cst_65 : f32 to vector<2x32xf32>
    %347 = arith.addf %346, %345 : vector<2x32xf32>
    %348 = arith.divf %346, %347 : vector<2x32xf32>
    %349 = arith.mulf %340, %323 : vector<2x32xf32>
    %350 = arith.mulf %334, %342 : vector<2x32xf32>
    %351 = arith.addf %349, %350 : vector<2x32xf32>
    %352 = math.tanh %351 : vector<2x32xf32>
    %353 = arith.mulf %348, %352 : vector<2x32xf32>
    %354 = vector.extract_strided_slice %239 {offsets = [8, 0], sizes = [2, 128], strides = [1, 1]} : vector<16x128xf32> to vector<2x128xf32>
    %cst_66 = arith.constant dense<0.000000e+00> : vector<2x128xf32>
    %355 = tpu.matmul %353, %235, %cst_66 {dimension_numbers = #tpu.dot_dimension_numbers<[1], [0], [0], [1], [0, 0, 1, 1], [], []>} : vector<2x32xf32>, vector<32x128xf32>, vector<2x128xf32> -> vector<2x128xf32>
    %356 = arith.addf %354, %355 : vector<2x128xf32>
    %357 = vector.extract_strided_slice %356 {offsets = [0, 0], sizes = [2, 32], strides = [1, 1]} : vector<2x128xf32> to vector<2x32xf32>
    %358 = arith.negf %357 : vector<2x32xf32>
    %359 = math.exp %358 : vector<2x32xf32>
    %cst_67 = arith.constant 1.000000e+00 : f32
    %360 = vector.broadcast %cst_67 : f32 to vector<2x32xf32>
    %361 = arith.addf %360, %359 : vector<2x32xf32>
    %362 = arith.divf %360, %361 : vector<2x32xf32>
    %363 = vector.extract_strided_slice %356 {offsets = [0, 32], sizes = [2, 32], strides = [1, 1]} : vector<2x128xf32> to vector<2x32xf32>
    %364 = arith.negf %363 : vector<2x32xf32>
    %365 = math.exp %364 : vector<2x32xf32>
    %cst_68 = arith.constant 1.000000e+00 : f32
    %366 = vector.broadcast %cst_68 : f32 to vector<2x32xf32>
    %367 = arith.addf %366, %365 : vector<2x32xf32>
    %368 = arith.divf %366, %367 : vector<2x32xf32>
    %369 = vector.extract_strided_slice %356 {offsets = [0, 64], sizes = [2, 32], strides = [1, 1]} : vector<2x128xf32> to vector<2x32xf32>
    %370 = math.tanh %369 : vector<2x32xf32>
    %371 = vector.extract_strided_slice %356 {offsets = [0, 96], sizes = [2, 32], strides = [1, 1]} : vector<2x128xf32> to vector<2x32xf32>
    %372 = arith.negf %371 : vector<2x32xf32>
    %373 = math.exp %372 : vector<2x32xf32>
    %cst_69 = arith.constant 1.000000e+00 : f32
    %374 = vector.broadcast %cst_69 : f32 to vector<2x32xf32>
    %375 = arith.addf %374, %373 : vector<2x32xf32>
    %376 = arith.divf %374, %375 : vector<2x32xf32>
    %377 = arith.mulf %368, %351 : vector<2x32xf32>
    %378 = arith.mulf %362, %370 : vector<2x32xf32>
    %379 = arith.addf %377, %378 : vector<2x32xf32>
    %380 = math.tanh %379 : vector<2x32xf32>
    %381 = arith.mulf %376, %380 : vector<2x32xf32>
    %382 = vector.extract_strided_slice %239 {offsets = [10, 0], sizes = [2, 128], strides = [1, 1]} : vector<16x128xf32> to vector<2x128xf32>
    %cst_70 = arith.constant dense<0.000000e+00> : vector<2x128xf32>
    %383 = tpu.matmul %381, %235, %cst_70 {dimension_numbers = #tpu.dot_dimension_numbers<[1], [0], [0], [1], [0, 0, 1, 1], [], []>} : vector<2x32xf32>, vector<32x128xf32>, vector<2x128xf32> -> vector<2x128xf32>
    %384 = arith.addf %382, %383 : vector<2x128xf32>
    %385 = vector.extract_strided_slice %384 {offsets = [0, 0], sizes = [2, 32], strides = [1, 1]} : vector<2x128xf32> to vector<2x32xf32>
    %386 = arith.negf %385 : vector<2x32xf32>
    %387 = math.exp %386 : vector<2x32xf32>
    %cst_71 = arith.constant 1.000000e+00 : f32
    %388 = vector.broadcast %cst_71 : f32 to vector<2x32xf32>
    %389 = arith.addf %388, %387 : vector<2x32xf32>
    %390 = arith.divf %388, %389 : vector<2x32xf32>
    %391 = vector.extract_strided_slice %384 {offsets = [0, 32], sizes = [2, 32], strides = [1, 1]} : vector<2x128xf32> to vector<2x32xf32>
    %392 = arith.negf %391 : vector<2x32xf32>
    %393 = math.exp %392 : vector<2x32xf32>
    %cst_72 = arith.constant 1.000000e+00 : f32
    %394 = vector.broadcast %cst_72 : f32 to vector<2x32xf32>
    %395 = arith.addf %394, %393 : vector<2x32xf32>
    %396 = arith.divf %394, %395 : vector<2x32xf32>
    %397 = vector.extract_strided_slice %384 {offsets = [0, 64], sizes = [2, 32], strides = [1, 1]} : vector<2x128xf32> to vector<2x32xf32>
    %398 = math.tanh %397 : vector<2x32xf32>
    %399 = vector.extract_strided_slice %384 {offsets = [0, 96], sizes = [2, 32], strides = [1, 1]} : vector<2x128xf32> to vector<2x32xf32>
    %400 = arith.negf %399 : vector<2x32xf32>
    %401 = math.exp %400 : vector<2x32xf32>
    %cst_73 = arith.constant 1.000000e+00 : f32
    %402 = vector.broadcast %cst_73 : f32 to vector<2x32xf32>
    %403 = arith.addf %402, %401 : vector<2x32xf32>
    %404 = arith.divf %402, %403 : vector<2x32xf32>
    %405 = arith.mulf %396, %379 : vector<2x32xf32>
    %406 = arith.mulf %390, %398 : vector<2x32xf32>
    %407 = arith.addf %405, %406 : vector<2x32xf32>
    %408 = math.tanh %407 : vector<2x32xf32>
    %409 = arith.mulf %404, %408 : vector<2x32xf32>
    %410 = vector.extract_strided_slice %239 {offsets = [12, 0], sizes = [2, 128], strides = [1, 1]} : vector<16x128xf32> to vector<2x128xf32>
    %cst_74 = arith.constant dense<0.000000e+00> : vector<2x128xf32>
    %411 = tpu.matmul %409, %235, %cst_74 {dimension_numbers = #tpu.dot_dimension_numbers<[1], [0], [0], [1], [0, 0, 1, 1], [], []>} : vector<2x32xf32>, vector<32x128xf32>, vector<2x128xf32> -> vector<2x128xf32>
    %412 = arith.addf %410, %411 : vector<2x128xf32>
    %413 = vector.extract_strided_slice %412 {offsets = [0, 0], sizes = [2, 32], strides = [1, 1]} : vector<2x128xf32> to vector<2x32xf32>
    %414 = arith.negf %413 : vector<2x32xf32>
    %415 = math.exp %414 : vector<2x32xf32>
    %cst_75 = arith.constant 1.000000e+00 : f32
    %416 = vector.broadcast %cst_75 : f32 to vector<2x32xf32>
    %417 = arith.addf %416, %415 : vector<2x32xf32>
    %418 = arith.divf %416, %417 : vector<2x32xf32>
    %419 = vector.extract_strided_slice %412 {offsets = [0, 32], sizes = [2, 32], strides = [1, 1]} : vector<2x128xf32> to vector<2x32xf32>
    %420 = arith.negf %419 : vector<2x32xf32>
    %421 = math.exp %420 : vector<2x32xf32>
    %cst_76 = arith.constant 1.000000e+00 : f32
    %422 = vector.broadcast %cst_76 : f32 to vector<2x32xf32>
    %423 = arith.addf %422, %421 : vector<2x32xf32>
    %424 = arith.divf %422, %423 : vector<2x32xf32>
    %425 = vector.extract_strided_slice %412 {offsets = [0, 64], sizes = [2, 32], strides = [1, 1]} : vector<2x128xf32> to vector<2x32xf32>
    %426 = math.tanh %425 : vector<2x32xf32>
    %427 = vector.extract_strided_slice %412 {offsets = [0, 96], sizes = [2, 32], strides = [1, 1]} : vector<2x128xf32> to vector<2x32xf32>
    %428 = arith.negf %427 : vector<2x32xf32>
    %429 = math.exp %428 : vector<2x32xf32>
    %cst_77 = arith.constant 1.000000e+00 : f32
    %430 = vector.broadcast %cst_77 : f32 to vector<2x32xf32>
    %431 = arith.addf %430, %429 : vector<2x32xf32>
    %432 = arith.divf %430, %431 : vector<2x32xf32>
    %433 = arith.mulf %424, %407 : vector<2x32xf32>
    %434 = arith.mulf %418, %426 : vector<2x32xf32>
    %435 = arith.addf %433, %434 : vector<2x32xf32>
    %436 = math.tanh %435 : vector<2x32xf32>
    %437 = arith.mulf %432, %436 : vector<2x32xf32>
    %438 = vector.extract_strided_slice %239 {offsets = [14, 0], sizes = [2, 128], strides = [1, 1]} : vector<16x128xf32> to vector<2x128xf32>
    %cst_78 = arith.constant dense<0.000000e+00> : vector<2x128xf32>
    %439 = tpu.matmul %437, %235, %cst_78 {dimension_numbers = #tpu.dot_dimension_numbers<[1], [0], [0], [1], [0, 0, 1, 1], [], []>} : vector<2x32xf32>, vector<32x128xf32>, vector<2x128xf32> -> vector<2x128xf32>
    %440 = arith.addf %438, %439 : vector<2x128xf32>
    %441 = vector.extract_strided_slice %440 {offsets = [0, 0], sizes = [2, 32], strides = [1, 1]} : vector<2x128xf32> to vector<2x32xf32>
    %442 = arith.negf %441 : vector<2x32xf32>
    %443 = math.exp %442 : vector<2x32xf32>
    %cst_79 = arith.constant 1.000000e+00 : f32
    %444 = vector.broadcast %cst_79 : f32 to vector<2x32xf32>
    %445 = arith.addf %444, %443 : vector<2x32xf32>
    %446 = arith.divf %444, %445 : vector<2x32xf32>
    %447 = vector.extract_strided_slice %440 {offsets = [0, 32], sizes = [2, 32], strides = [1, 1]} : vector<2x128xf32> to vector<2x32xf32>
    %448 = arith.negf %447 : vector<2x32xf32>
    %449 = math.exp %448 : vector<2x32xf32>
    %cst_80 = arith.constant 1.000000e+00 : f32
    %450 = vector.broadcast %cst_80 : f32 to vector<2x32xf32>
    %451 = arith.addf %450, %449 : vector<2x32xf32>
    %452 = arith.divf %450, %451 : vector<2x32xf32>
    %453 = vector.extract_strided_slice %440 {offsets = [0, 64], sizes = [2, 32], strides = [1, 1]} : vector<2x128xf32> to vector<2x32xf32>
    %454 = math.tanh %453 : vector<2x32xf32>
    %455 = vector.extract_strided_slice %440 {offsets = [0, 96], sizes = [2, 32], strides = [1, 1]} : vector<2x128xf32> to vector<2x32xf32>
    %456 = arith.negf %455 : vector<2x32xf32>
    %457 = math.exp %456 : vector<2x32xf32>
    %cst_81 = arith.constant 1.000000e+00 : f32
    %458 = vector.broadcast %cst_81 : f32 to vector<2x32xf32>
    %459 = arith.addf %458, %457 : vector<2x32xf32>
    %460 = arith.divf %458, %459 : vector<2x32xf32>
    %461 = arith.mulf %452, %435 : vector<2x32xf32>
    %462 = arith.mulf %446, %454 : vector<2x32xf32>
    %463 = arith.addf %461, %462 : vector<2x32xf32>
    %464 = math.tanh %463 : vector<2x32xf32>
    %465 = arith.mulf %460, %464 : vector<2x32xf32>
    %c0_82 = arith.constant 0 : index
    %c0_83 = arith.constant 0 : index
    %466 = vector.load %arg7[%c0_82, %c0_83] : memref<32x128xf32, #tpu.memory_space<vmem>>, vector<32x128xf32>
    %cst_84 = arith.constant dense<0.000000e+00> : vector<2x128xf32>
    %467 = tpu.matmul %465, %466, %cst_84 {dimension_numbers = #tpu.dot_dimension_numbers<[1], [0], [0], [1], [0, 0, 1, 1], [], []>} : vector<2x32xf32>, vector<32x128xf32>, vector<2x128xf32> -> vector<2x128xf32>
    %c0_85 = arith.constant 0 : index
    %c0_86 = arith.constant 0 : index
    %468 = vector.load %arg8[%c0_85, %c0_86] : memref<1x128xf32, #tpu.memory_space<vmem>>, vector<1x128xf32>
    %469 = vector.broadcast %468 : vector<1x128xf32> to vector<2x128xf32>
    %470 = arith.addf %467, %469 : vector<2x128xf32>
    %c0_87 = arith.constant 0 : index
    %c0_88 = arith.constant 0 : index
    %471 = vector.load %arg9[%c0_87, %c0_88] : memref<2x128xf32, #tpu.memory_space<vmem>>, vector<2x128xf32>
    tpu.vector_store %arg9[%c0_87, %c0_88], %470 {strides = array<i32>} : memref<2x128xf32, #tpu.memory_space<vmem>>, vector<2x128xf32>,
    return
  }
}

</mosaic_0001>

<llo_original>
// kernel: lstm_classifier_forward.1
$region0: #{lstm_classifier_forward.1}
  #allocation0 [shape = 'u32[]', space=smem, size = 0x4, offset = 0x4, fixed_abs, tag = 'smem constant byte address 0x4 - core index']
  #allocation1 [shape = 'u32[144,128]{1,0:T(1,128)}', space=vmem, size = 0x12000, scoped, tag = 'internal scratch']
  %s0 = inlined_call_operand.vmem [shape: f32[16,16], index: 0, kind: input, shape index: {}]
  %s1 = inlined_call_operand.vmem [shape: f32[16,128], index: 1, kind: input, shape index: {}]
  %s2 = inlined_call_operand.vmem [shape: f32[32,128], index: 2, kind: input, shape index: {}]
  %s3 = inlined_call_operand.vmem [shape: f32[1,128], index: 3, kind: input, shape index: {}]
  %s4 = inlined_call_operand.vmem [shape: f32[32,128], index: 4, kind: input, shape index: {}]
  %s5 = inlined_call_operand.vmem [shape: f32[32,128], index: 5, kind: input, shape index: {}]
  %s6 = inlined_call_operand.vmem [shape: f32[1,128], index: 6, kind: input, shape index: {}]
  %s7 = inlined_call_operand.vmem [shape: f32[32,128], index: 7, kind: input, shape index: {}]
  %s8 = inlined_call_operand.vmem [shape: f32[1,128], index: 8, kind: input, shape index: {}]
  %s9 = inlined_call_operand.vmem [shape: f32[2,128], index: 9, kind: output, shape index: {}]
  %s10 = sld [smem:[#allocation0]]
  $region46: #{lstm_classifier_forward.1} parent=0
    _
  %s12 = ssub.s32 1, %s10
  %s13 = scalar_select 0, %s12, %s10
  // Predicated region
  $region2: #{lstm_classifier_forward.1} parent=0 // pred_check
    _
  $region3: #{lstm_classifier_forward.1} parent=0 // pred_check_branch
    %15 = sbr.rel (0) target = $region5
  $region4: #{lstm_classifier_forward.1} parent=0 // pred_region
    _
  $region5: #{lstm_classifier_forward.1} parent=0 // pred_fallthru
    _
  // Predicated region
  $region6: #{lstm_classifier_forward.1} parent=0 // pred_check
    _
  $region7: #{lstm_classifier_forward.1} parent=0 // pred_check_branch
    %17 = sbr.rel (0) target = $region9
  $region8: #{lstm_classifier_forward.1} parent=0 // pred_region
    _
  $region9: #{lstm_classifier_forward.1} parent=0 // pred_fallthru
    _
  // Predicated region
  $region10: #{lstm_classifier_forward.1} parent=0 // pred_check
    _
  $region11: #{lstm_classifier_forward.1} parent=0 // pred_check_branch
    %19 = sbr.rel (0) target = $region13
  $region12: #{lstm_classifier_forward.1} parent=0 // pred_region
    _
  $region13: #{lstm_classifier_forward.1} parent=0 // pred_fallthru
    _
  // Predicated region
  $region14: #{lstm_classifier_forward.1} parent=0 // pred_check
    _
  $region15: #{lstm_classifier_forward.1} parent=0 // pred_check_branch
    %21 = sbr.rel (0) target = $region17
  $region16: #{lstm_classifier_forward.1} parent=0 // pred_region
    _
  $region17: #{lstm_classifier_forward.1} parent=0 // pred_fallthru
    _
  // Predicated region
  $region18: #{lstm_classifier_forward.1} parent=0 // pred_check
    _
  $region19: #{lstm_classifier_forward.1} parent=0 // pred_check_branch
    %23 = sbr.rel (0) target = $region21
  $region20: #{lstm_classifier_forward.1} parent=0 // pred_region
    _
  $region21: #{lstm_classifier_forward.1} parent=0 // pred_fallthru
    _
  // Predicated region
  $region22: #{lstm_classifier_forward.1} parent=0 // pred_check
    _
  $region23: #{lstm_classifier_forward.1} parent=0 // pred_check_branch
    %25 = sbr.rel (0) target = $region25
  $region24: #{lstm_classifier_forward.1} parent=0 // pred_region
    _
  $region25: #{lstm_classifier_forward.1} parent=0 // pred_fallthru
    _
  // Predicated region
  $region26: #{lstm_classifier_forward.1} parent=0 // pred_check
    _
  $region27: #{lstm_classifier_forward.1} parent=0 // pred_check_branch
    %27 = sbr.rel (0) target = $region29
  $region28: #{lstm_classifier_forward.1} parent=0 // pred_region
    _
  $region29: #{lstm_classifier_forward.1} parent=0 // pred_fallthru
    _
  // Predicated region
  $region30: #{lstm_classifier_forward.1} parent=0 // pred_check
    _
  $region31: #{lstm_classifier_forward.1} parent=0 // pred_check_branch
    %29 = sbr.rel (0) target = $region33
  $region32: #{lstm_classifier_forward.1} parent=0 // pred_region
    _
  $region33: #{lstm_classifier_forward.1} parent=0 // pred_fallthru
    _
  // Predicated region
  $region34: #{lstm_classifier_forward.1} parent=0 // pred_check
    _
  $region35: #{lstm_classifier_forward.1} parent=0 // pred_check_branch
    %31 = sbr.rel (0) target = $region37
  $region36: #{lstm_classifier_forward.1} parent=0 // pred_region
    _
  $region37: #{lstm_classifier_forward.1} parent=0 // pred_fallthru
    _
  %v32 = vld [vmem:[%s0] sm:$0xff]
  %v33 = vld [vmem:[%s0 + $0x8] sm:$0xff]
  %v34 = vld [vmem:[%s1] sm:$0xff]
  %v35 = vld [vmem:[%s1 + $0x8] sm:$0xff]
  %v36 = vld [vmem:[%s2] sm:$0xff]
  %v37 = vld [vmem:[%s2 + $0x8] sm:$0xff]
  %v38 = vld [vmem:[%s2 + $0x10] sm:$0xff]
  %v39 = vld [vmem:[%s2 + $0x18] sm:$0xff]
  %v40 = vld [vmem:[%s3] sm:$0x1]
  %v42 = vlaneseq
  %v43 = vshrl.u32 %v42, 7
  %v44 = vsub.s32 0, %v43
  %v45 = vrot.slane %v40, %v44
  %vm47 = vcmask 130048
  %v49 = vsel %vm47, %v32, 0
  %v52 = vsel %vm47, %v33, 0
  %54 = vmatprep.subr.mxu0 0.0
  %55 = vmatpush1.msra.mxu0 0.0
  %56 = vmatprep.subr.mxu0 0.0
  %57 = vmatpush1.msra.mxu0 0.0
  %58 = vmatprep.subr.mxu0 0.0
  %59 = vmatpush1.msra.mxu0 0.0
  %60 = vmatprep.subr.mxu0 0.0
  %61 = vmatpush1.msra.mxu0 0.0
  %62 = vmatprep.subr.mxu0 0.0
  %63 = vmatpush1.msra.mxu0 0.0
  %64 = vmatprep.subr.mxu0 0.0
  %65 = vmatpush1.msra.mxu0 0.0
  %66 = vmatprep.subr.mxu0 0.0
  %67 = vmatpush1.msra.mxu0 0.0
  %68 = vmatprep.subr.mxu0 0.0
  %69 = vmatpush1.msra.mxu0 0.0
  %70 = vmatprep.subr.mxu0 0.0
  %71 = vmatpush1.msra.mxu0 0.0
  %72 = vmatprep.subr.mxu0 0.0
  %73 = vmatpush1.msra.mxu0 0.0
  %74 = vmatprep.subr.mxu0 0.0
  %75 = vmatpush1.msra.mxu0 0.0
  %76 = vmatprep.subr.mxu0 0.0
  %77 = vmatpush1.msra.mxu0 0.0
  %78 = vmatprep.subr.mxu0 0.0
  %79 = vmatpush1.msra.mxu0 0.0
  %80 = vmatprep.subr.mxu0 0.0
  %81 = vmatpush1.msra.mxu0 0.0
  %82 = vmatprep.subr.mxu0 0.0
  %83 = vmatpush1.msra.mxu0 %v35
  %84 = vmatprep.subr.mxu0 0.0
  %85 = vmatpush1.msra.mxu0 %v34
  %86 = vmatprep.subr.mxu0 0.0
  %87 = vmatpush2.msra.mxu0 0.0
  %88 = vmatprep.subr.mxu0 0.0
  %89 = vmatpush2.msra.mxu0 0.0
  %90 = vmatprep.subr.mxu0 0.0
  %91 = vmatpush2.msra.mxu0 0.0
  %92 = vmatprep.subr.mxu0 0.0
  %93 = vmatpush2.msra.mxu0 0.0
  %94 = vmatprep.subr.mxu0 0.0
  %95 = vmatpush2.msra.mxu0 0.0
  %96 = vmatprep.subr.mxu0 0.0
  %97 = vmatpush2.msra.mxu0 0.0
  %98 = vmatprep.subr.mxu0 0.0
  %99 = vmatpush2.msra.mxu0 0.0
  %100 = vmatprep.subr.mxu0 0.0
  %101 = vmatpush2.msra.mxu0 0.0
  %102 = vmatprep.subr.mxu0 0.0
  %103 = vmatpush2.msra.mxu0 0.0
  %104 = vmatprep.subr.mxu0 0.0
  %105 = vmatpush2.msra.mxu0 0.0
  %106 = vmatprep.subr.mxu0 0.0
  %107 = vmatpush2.msra.mxu0 0.0
  %108 = vmatprep.subr.mxu0 0.0
  %109 = vmatpush2.msra.mxu0 0.0
  %110 = vmatprep.subr.mxu0 0.0
  %111 = vmatpush2.msra.mxu0 0.0
  %112 = vmatprep.subr.mxu0 0.0
  %113 = vmatpush2.msra.mxu0 0.0
  %114 = vmatprep.subr.mxu0 0.0
  %115 = vmatpush2.msra.mxu0 0.0
  %116 = vmatprep.subr.mxu0 0.0
  %117 = vmatpush2.msra.mxu0 0.0
  %118 = vmatprep.mubr.f32.mxu0 0.0
  %119 = vmatmul.mubr.f32.gmra.mxu0 %v49
  %v120 = vpop.f32.mrf.mxu0
  %v121 = vadd.f32 %v45, %v120
  %v122 = vpop.f32.mrf.mxu0
  %123 = vmatprep.mubr.f32.mxu0 0.0
  %124 = vmatmul.mubr.f32.gmra.mxu0 %v52
  %v125 = vpop.f32.mrf.mxu0
  %v126 = vadd.f32 %v45, %v125
  %v127 = vpop.f32.mrf.mxu0
  %128 = vdwg.mxu0
  %vm129 = vcmask 261120
  %v131 = vsel %vm129, 0.0, 0
  %133 = vmatprep.subr.mxu0 0.0
  %134 = vmatpush1.msra.mxu0 0.0
  %135 = vmatprep.subr.mxu0 0.0
  %136 = vmatpush1.msra.mxu0 0.0
  %137 = vmatprep.subr.mxu0 0.0
  %138 = vmatpush1.msra.mxu0 0.0
  %139 = vmatprep.subr.mxu0 0.0
  %140 = vmatpush1.msra.mxu0 0.0
  %141 = vmatprep.subr.mxu0 0.0
  %142 = vmatpush1.msra.mxu0 0.0
  %143 = vmatprep.subr.mxu0 0.0
  %144 = vmatpush1.msra.mxu0 0.0
  %145 = vmatprep.subr.mxu0 0.0
  %146 = vmatpush1.msra.mxu0 0.0
  %147 = vmatprep.subr.mxu0 0.0
  %148 = vmatpush1.msra.mxu0 0.0
  %149 = vmatprep.subr.mxu0 0.0
  %150 = vmatpush1.msra.mxu0 0.0
  %151 = vmatprep.subr.mxu0 0.0
  %152 = vmatpush1.msra.mxu0 0.0
  %153 = vmatprep.subr.mxu0 0.0
  %154 = vmatpush1.msra.mxu0 0.0
  %155 = vmatprep.subr.mxu0 0.0
  %156 = vmatpush1.msra.mxu0 0.0
  %157 = vmatprep.subr.mxu0 0.0
  %158 = vmatpush1.msra.mxu0 %v39
  %159 = vmatprep.subr.mxu0 0.0
  %160 = vmatpush1.msra.mxu0 %v38
  %161 = vmatprep.subr.mxu0 0.0
  %162 = vmatpush1.msra.mxu0 %v37
  %163 = vmatprep.subr.mxu0 0.0
  %164 = vmatpush1.msra.mxu0 %v36
  %165 = vmatprep.subr.mxu0 0.0
  %166 = vmatpush2.msra.mxu0 0.0
  %167 = vmatprep.subr.mxu0 0.0
  %168 = vmatpush2.msra.mxu0 0.0
  %169 = vmatprep.subr.mxu0 0.0
  %170 = vmatpush2.msra.mxu0 0.0
  %171 = vmatprep.subr.mxu0 0.0
  %172 = vmatpush2.msra.mxu0 0.0
  %173 = vmatprep.subr.mxu0 0.0
  %174 = vmatpush2.msra.mxu0 0.0
  %175 = vmatprep.subr.mxu0 0.0
  %176 = vmatpush2.msra.mxu0 0.0
  %177 = vmatprep.subr.mxu0 0.0
  %178 = vmatpush2.msra.mxu0 0.0
  %179 = vmatprep.subr.mxu0 0.0
  %180 = vmatpush2.msra.mxu0 0.0
  %181 = vmatprep.subr.mxu0 0.0
  %182 = vmatpush2.msra.mxu0 0.0
  %183 = vmatprep.subr.mxu0 0.0
  %184 = vmatpush2.msra.mxu0 0.0
  %185 = vmatprep.subr.mxu0 0.0
  %186 = vmatpush2.msra.mxu0 0.0
  %187 = vmatprep.subr.mxu0 0.0
  %188 = vmatpush2.msra.mxu0 0.0
  %189 = vmatprep.subr.mxu0 0.0
  %190 = vmatpush2.msra.mxu0 0.0
  %191 = vmatprep.subr.mxu0 0.0
  %192 = vmatpush2.msra.mxu0 0.0
  %193 = vmatprep.subr.mxu0 0.0
  %194 = vmatpush2.msra.mxu0 0.0
  %195 = vmatprep.subr.mxu0 0.0
  %196 = vmatpush2.msra.mxu0 0.0
  %197 = vmatprep.mubr.f32.mxu0 0.0
  %198 = vmatmul.mubr.f32.gmra.mxu0 %v131
  %v199 = vpop.f32.mrf.mxu0
  %v200 = vadd.f32 0.0, %v199
  %v201 = vpop.f32.mrf.mxu0
  %202 = vdwg.mxu0
  %v203 = vadd.f32 %v121, %v200
  %v204 = vxor.u32 %v203, 2147483648
  %v205 = vmul.f32 %v204, 1.442695
  %v206 = vpow.pop %v205
  %v207 = vadd.f32 %v206, 1.0
  %v208 = vrcp.pop %v207
  %v209 = vmul.f32 1.0, %v208
  %v210 = vtanh.pop %v203
  %v211 = vmul.f32 %v209, 0.0
  %213 = vrot.lane.b32.xlu0 %v210, 64
  %v214 = vpop.permute.xlu0 %213
  %v216 = vmul.f32 %v209, %v214
  %218 = vrot.lane.b32.xlu0 %v216, 32
  %v219 = vpop.permute.xlu0 %218
  %v221 = vadd.f32 %v211, %v219
  %v222 = vtanh.pop %v221
  %224 = vrot.lane.b32.xlu0 %v222, 64
  %v225 = vpop.permute.xlu0 %224
  %v227 = vmul.f32 %v209, %v225
  %229 = vrot.lane.b32.xlu0 %v227, 32
  %v230 = vpop.permute.xlu0 %229
  %v231 = vsel %vm129, %v230, 0
  %233 = vmatprep.subr.mxu0 0.0
  %234 = vmatpush1.msra.mxu0 0.0
  %235 = vmatprep.subr.mxu0 0.0
  %236 = vmatpush1.msra.mxu0 0.0
  %237 = vmatprep.subr.mxu0 0.0
  %238 = vmatpush1.msra.mxu0 0.0
  %239 = vmatprep.subr.mxu0 0.0
  %240 = vmatpush1.msra.mxu0 0.0
  %241 = vmatprep.subr.mxu0 0.0
  %242 = vmatpush1.msra.mxu0 0.0
  %243 = vmatprep.subr.mxu0 0.0
  %244 = vmatpush1.msra.mxu0 0.0
  %245 = vmatprep.subr.mxu0 0.0
  %246 = vmatpush1.msra.mxu0 0.0
  %247 = vmatprep.subr.mxu0 0.0
  %248 = vmatpush1.msra.mxu0 0.0
  %249 = vmatprep.subr.mxu0 0.0
  %250 = vmatpush1.msra.mxu0 0.0
  %251 = vmatprep.subr.mxu0 0.0
  %252 = vmatpush1.msra.mxu0 0.0
  %253 = vmatprep.subr.mxu0 0.0
  %254 = vmatpush1.msra.mxu0 0.0
  %255 = vmatprep.subr.mxu0 0.0
  %256 = vmatpush1.msra.mxu0 0.0
  %257 = vmatprep.subr.mxu0 0.0
  %258 = vmatpush1.msra.mxu0 %v39
  %259 = vmatprep.subr.mxu0 0.0
  %260 = vmatpush1.msra.mxu0 %v38
  %261 = vmatprep.subr.mxu0 0.0
  %262 = vmatpush1.msra.mxu0 %v37
  %263 = vmatprep.subr.mxu0 0.0
  %264 = vmatpush1.msra.mxu0 %v36
  %265 = vmatprep.subr.mxu0 0.0
  %266 = vmatpush2.msra.mxu0 0.0
  %267 = vmatprep.subr.mxu0 0.0
  %268 = vmatpush2.msra.mxu0 0.0
  %269 = vmatprep.subr.mxu0 0.0
  %270 = vmatpush2.msra.mxu0 0.0
  %271 = vmatprep.subr.mxu0 0.0
  %272 = vmatpush2.msra.mxu0 0.0
  %273 = vmatprep.subr.mxu0 0.0
  %274 = vmatpush2.msra.mxu0 0.0
  %275 = vmatprep.subr.mxu0 0.0
  %276 = vmatpush2.msra.mxu0 0.0
  %277 = vmatprep.subr.mxu0 0.0
  %278 = vmatpush2.msra.mxu0 0.0
  %279 = vmatprep.subr.mxu0 0.0
  %280 = vmatpush2.msra.mxu0 0.0
  %281 = vmatprep.subr.mxu0 0.0
  %282 = vmatpush2.msra.mxu0 0.0
  %283 = vmatprep.subr.mxu0 0.0
  %284 = vmatpush2.msra.mxu0 0.0
  %285 = vmatprep.subr.mxu0 0.0
  %286 = vmatpush2.msra.mxu0 0.0
  %287 = vmatprep.subr.mxu0 0.0
  %288 = vmatpush2.msra.mxu0 0.0
  %289 = vmatprep.subr.mxu0 0.0
  %290 = vmatpush2.msra.mxu0 0.0
  %291 = vmatprep.subr.mxu0 0.0
  %292 = vmatpush2.msra.mxu0 0.0
  %293 = vmatprep.subr.mxu0 0.0
  %294 = vmatpush2.msra.mxu0 0.0
  %295 = vmatprep.subr.mxu0 0.0
  %296 = vmatpush2.msra.mxu0 0.0
  %297 = vmatprep.mubr.f32.mxu0 0.0
  %298 = vmatmul.mubr.f32.gmra.mxu0 %v231
  %v299 = vpop.f32.mrf.mxu0
  %v300 = vadd.f32 0.0, %v299
  %v301 = vpop.f32.mrf.mxu0
  %302 = vdwg.mxu0
  %v304 = vrot.slane %v300, 6
  %v306 = vadd.f32 %v121, %v304
  %v307 = vxor.u32 %v306, 2147483648
  %v308 = vmul.f32 %v307, 1.442695
  %v309 = vpow.pop %v308
  %v310 = vadd.f32 %v309, 1.0
  %v311 = vrcp.pop %v310
  %v312 = vmul.f32 1.0, %v311
  %v313 = vtanh.pop %v306
  %v315 = vrot.slane %v221, 6
  %v317 = vmul.f32 %v312, %v315
  %319 = vrot.lane.b32.xlu0 %v313, 64
  %v320 = vpop.permute.xlu0 %319
  %v322 = vmul.f32 %v312, %v320
  %324 = vrot.lane.b32.xlu0 %v322, 32
  %v325 = vpop.permute.xlu0 %324
  %v327 = vadd.f32 %v317, %v325
  %v328 = vtanh.pop %v327
  %330 = vrot.lane.b32.xlu0 %v328, 64
  %v331 = vpop.permute.xlu0 %330
  %v333 = vmul.f32 %v312, %v331
  %v335 = vrot.slane %v333, 2
  %336 = vrot.lane.b32.xlu0 %v335, 32
  %v337 = vpop.permute.xlu0 %336
  %v338 = vsel %vm129, %v337, 0
  %340 = vmatprep.subr.mxu0 0.0
  %341 = vmatpush1.msra.mxu0 0.0
  %342 = vmatprep.subr.mxu0 0.0
  %343 = vmatpush1.msra.mxu0 0.0
  %344 = vmatprep.subr.mxu0 0.0
  %345 = vmatpush1.msra.mxu0 0.0
  %346 = vmatprep.subr.mxu0 0.0
  %347 = vmatpush1.msra.mxu0 0.0
  %348 = vmatprep.subr.mxu0 0.0
  %349 = vmatpush1.msra.mxu0 0.0
  %350 = vmatprep.subr.mxu0 0.0
  %351 = vmatpush1.msra.mxu0 0.0
  %352 = vmatprep.subr.mxu0 0.0
  %353 = vmatpush1.msra.mxu0 0.0
  %354 = vmatprep.subr.mxu0 0.0
  %355 = vmatpush1.msra.mxu0 0.0
  %356 = vmatprep.subr.mxu0 0.0
  %357 = vmatpush1.msra.mxu0 0.0
  %358 = vmatprep.subr.mxu0 0.0
  %359 = vmatpush1.msra.mxu0 0.0
  %360 = vmatprep.subr.mxu0 0.0
  %361 = vmatpush1.msra.mxu0 0.0
  %362 = vmatprep.subr.mxu0 0.0
  %363 = vmatpush1.msra.mxu0 0.0
  %364 = vmatprep.subr.mxu0 0.0
  %365 = vmatpush1.msra.mxu0 %v39
  %366 = vmatprep.subr.mxu0 0.0
  %367 = vmatpush1.msra.mxu0 %v38
  %368 = vmatprep.subr.mxu0 0.0
  %369 = vmatpush1.msra.mxu0 %v37
  %370 = vmatprep.subr.mxu0 0.0
  %371 = vmatpush1.msra.mxu0 %v36
  %372 = vmatprep.subr.mxu0 0.0
  %373 = vmatpush2.msra.mxu0 0.0
  %374 = vmatprep.subr.mxu0 0.0
  %375 = vmatpush2.msra.mxu0 0.0
  %376 = vmatprep.subr.mxu0 0.0
  %377 = vmatpush2.msra.mxu0 0.0
  %378 = vmatprep.subr.mxu0 0.0
  %379 = vmatpush2.msra.mxu0 0.0
  %380 = vmatprep.subr.mxu0 0.0
  %381 = vmatpush2.msra.mxu0 0.0
  %382 = vmatprep.subr.mxu0 0.0
  %383 = vmatpush2.msra.mxu0 0.0
  %384 = vmatprep.subr.mxu0 0.0
  %385 = vmatpush2.msra.mxu0 0.0
  %386 = vmatprep.subr.mxu0 0.0
  %387 = vmatpush2.msra.mxu0 0.0
  %388 = vmatprep.subr.mxu0 0.0
  %389 = vmatpush2.msra.mxu0 0.0
  %390 = vmatprep.subr.mxu0 0.0
  %391 = vmatpush2.msra.mxu0 0.0
  %392 = vmatprep.subr.mxu0 0.0
  %393 = vmatpush2.msra.mxu0 0.0
  %394 = vmatprep.subr.mxu0 0.0
  %395 = vmatpush2.msra.mxu0 0.0
  %396 = vmatprep.subr.mxu0 0.0
  %397 = vmatpush2.msra.mxu0 0.0
  %398 = vmatprep.subr.mxu0 0.0
  %399 = vmatpush2.msra.mxu0 0.0
  %400 = vmatprep.subr.mxu0 0.0
  %401 = vmatpush2.msra.mxu0 0.0
  %402 = vmatprep.subr.mxu0 0.0
  %403 = vmatpush2.msra.mxu0 0.0
  %404 = vmatprep.mubr.f32.mxu0 0.0
  %405 = vmatmul.mubr.f32.gmra.mxu0 %v338
  %v406 = vpop.f32.mrf.mxu0
  %v407 = vadd.f32 0.0, %v406
  %v408 = vpop.f32.mrf.mxu0
  %409 = vdwg.mxu0
  %v411 = vrot.slane %v407, 4
  %v413 = vadd.f32 %v121, %v411
  %v414 = vxor.u32 %v413, 2147483648
  %v415 = vmul.f32 %v414, 1.442695
  %v416 = vpow.pop %v415
  %v417 = vadd.f32 %v416, 1.0
  %v418 = vrcp.pop %v417
  %v419 = vmul.f32 1.0, %v418
  %v420 = vtanh.pop %v413
  %v422 = vrot.slane %v327, 6
  %v424 = vmul.f32 %v419, %v422
  %426 = vrot.lane.b32.xlu0 %v420, 64
  %v427 = vpop.permute.xlu0 %426
  %v429 = vmul.f32 %v419, %v427
  %431 = vrot.lane.b32.xlu0 %v429, 32
  %v432 = vpop.permute.xlu0 %431
  %v434 = vadd.f32 %v424, %v432
  %v435 = vtanh.pop %v434
  %437 = vrot.lane.b32.xlu0 %v435, 64
  %v438 = vpop.permute.xlu0 %437
  %v440 = vmul.f32 %v419, %v438
  %v442 = vrot.slane %v440, 4
  %443 = vrot.lane.b32.xlu0 %v442, 32
  %v444 = vpop.permute.xlu0 %443
  %v445 = vsel %vm129, %v444, 0
  %447 = vmatprep.subr.mxu0 0.0
  %448 = vmatpush1.msra.mxu0 0.0
  %449 = vmatprep.subr.mxu0 0.0
  %450 = vmatpush1.msra.mxu0 0.0
  %451 = vmatprep.subr.mxu0 0.0
  %452 = vmatpush1.msra.mxu0 0.0
  %453 = vmatprep.subr.mxu0 0.0
  %454 = vmatpush1.msra.mxu0 0.0
  %455 = vmatprep.subr.mxu0 0.0
  %456 = vmatpush1.msra.mxu0 0.0
  %457 = vmatprep.subr.mxu0 0.0
  %458 = vmatpush1.msra.mxu0 0.0
  %459 = vmatprep.subr.mxu0 0.0
  %460 = vmatpush1.msra.mxu0 0.0
  %461 = vmatprep.subr.mxu0 0.0
  %462 = vmatpush1.msra.mxu0 0.0
  %463 = vmatprep.subr.mxu0 0.0
  %464 = vmatpush1.msra.mxu0 0.0
  %465 = vmatprep.subr.mxu0 0.0
  %466 = vmatpush1.msra.mxu0 0.0
  %467 = vmatprep.subr.mxu0 0.0
  %468 = vmatpush1.msra.mxu0 0.0
  %469 = vmatprep.subr.mxu0 0.0
  %470 = vmatpush1.msra.mxu0 0.0
  %471 = vmatprep.subr.mxu0 0.0
  %472 = vmatpush1.msra.mxu0 %v39
  %473 = vmatprep.subr.mxu0 0.0
  %474 = vmatpush1.msra.mxu0 %v38
  %475 = vmatprep.subr.mxu0 0.0
  %476 = vmatpush1.msra.mxu0 %v37
  %477 = vmatprep.subr.mxu0 0.0
  %478 = vmatpush1.msra.mxu0 %v36
  %479 = vmatprep.subr.mxu0 0.0
  %480 = vmatpush2.msra.mxu0 0.0
  %481 = vmatprep.subr.mxu0 0.0
  %482 = vmatpush2.msra.mxu0 0.0
  %483 = vmatprep.subr.mxu0 0.0
  %484 = vmatpush2.msra.mxu0 0.0
  %485 = vmatprep.subr.mxu0 0.0
  %486 = vmatpush2.msra.mxu0 0.0
  %487 = vmatprep.subr.mxu0 0.0
  %488 = vmatpush2.msra.mxu0 0.0
  %489 = vmatprep.subr.mxu0 0.0
  %490 = vmatpush2.msra.mxu0 0.0
  %491 = vmatprep.subr.mxu0 0.0
  %492 = vmatpush2.msra.mxu0 0.0
  %493 = vmatprep.subr.mxu0 0.0
  %494 = vmatpush2.msra.mxu0 0.0
  %495 = vmatprep.subr.mxu0 0.0
  %496 = vmatpush2.msra.mxu0 0.0
  %497 = vmatprep.subr.mxu0 0.0
  %498 = vmatpush2.msra.mxu0 0.0
  %499 = vmatprep.subr.mxu0 0.0
  %500 = vmatpush2.msra.mxu0 0.0
  %501 = vmatprep.subr.mxu0 0.0
  %502 = vmatpush2.msra.mxu0 0.0
  %503 = vmatprep.subr.mxu0 0.0
  %504 = vmatpush2.msra.mxu0 0.0
  %505 = vmatprep.subr.mxu0 0.0
  %506 = vmatpush2.msra.mxu0 0.0
  %507 = vmatprep.subr.mxu0 0.0
  %508 = vmatpush2.msra.mxu0 0.0
  %509 = vmatprep.subr.mxu0 0.0
  %510 = vmatpush2.msra.mxu0 0.0
  %511 = vmatprep.mubr.f32.mxu0 0.0
  %512 = vmatmul.mubr.f32.gmra.mxu0 %v445
  %v513 = vpop.f32.mrf.mxu0
  %v514 = vadd.f32 0.0, %v513
  %v515 = vpop.f32.mrf.mxu0
  %516 = vdwg.mxu0
  %v518 = vrot.slane %v514, 2
  %v520 = vadd.f32 %v121, %v518
  %v521 = vxor.u32 %v520, 2147483648
  %v522 = vmul.f32 %v521, 1.442695
  %v523 = vpow.pop %v522
  %v524 = vadd.f32 %v523, 1.0
  %v525 = vrcp.pop %v524
  %v526 = vmul.f32 1.0, %v525
  %v527 = vtanh.pop %v520
  %v529 = vrot.slane %v434, 6
  %v531 = vmul.f32 %v526, %v529
  %533 = vrot.lane.b32.xlu0 %v527, 64
  %v534 = vpop.permute.xlu0 %533
  %v536 = vmul.f32 %v526, %v534
  %538 = vrot.lane.b32.xlu0 %v536, 32
  %v539 = vpop.permute.xlu0 %538
  %v541 = vadd.f32 %v531, %v539
  %v542 = vtanh.pop %v541
  %544 = vrot.lane.b32.xlu0 %v542, 64
  %v545 = vpop.permute.xlu0 %544
  %v547 = vmul.f32 %v526, %v545
  %v549 = vrot.slane %v547, 6
  %550 = vrot.lane.b32.xlu0 %v549, 32
  %v551 = vpop.permute.xlu0 %550
  %v552 = vsel %vm129, %v551, 0
  %554 = vmatprep.subr.mxu0 0.0
  %555 = vmatpush1.msra.mxu0 0.0
  %556 = vmatprep.subr.mxu0 0.0
  %557 = vmatpush1.msra.mxu0 0.0
  %558 = vmatprep.subr.mxu0 0.0
  %559 = vmatpush1.msra.mxu0 0.0
  %560 = vmatprep.subr.mxu0 0.0
  %561 = vmatpush1.msra.mxu0 0.0
  %562 = vmatprep.subr.mxu0 0.0
  %563 = vmatpush1.msra.mxu0 0.0
  %564 = vmatprep.subr.mxu0 0.0
  %565 = vmatpush1.msra.mxu0 0.0
  %566 = vmatprep.subr.mxu0 0.0
  %567 = vmatpush1.msra.mxu0 0.0
  %568 = vmatprep.subr.mxu0 0.0
  %569 = vmatpush1.msra.mxu0 0.0
  %570 = vmatprep.subr.mxu0 0.0
  %571 = vmatpush1.msra.mxu0 0.0
  %572 = vmatprep.subr.mxu0 0.0
  %573 = vmatpush1.msra.mxu0 0.0
  %574 = vmatprep.subr.mxu0 0.0
  %575 = vmatpush1.msra.mxu0 0.0
  %576 = vmatprep.subr.mxu0 0.0
  %577 = vmatpush1.msra.mxu0 0.0
  %578 = vmatprep.subr.mxu0 0.0
  %579 = vmatpush1.msra.mxu0 %v39
  %580 = vmatprep.subr.mxu0 0.0
  %581 = vmatpush1.msra.mxu0 %v38
  %582 = vmatprep.subr.mxu0 0.0
  %583 = vmatpush1.msra.mxu0 %v37
  %584 = vmatprep.subr.mxu0 0.0
  %585 = vmatpush1.msra.mxu0 %v36
  %586 = vmatprep.subr.mxu0 0.0
  %587 = vmatpush2.msra.mxu0 0.0
  %588 = vmatprep.subr.mxu0 0.0
  %589 = vmatpush2.msra.mxu0 0.0
  %590 = vmatprep.subr.mxu0 0.0
  %591 = vmatpush2.msra.mxu0 0.0
  %592 = vmatprep.subr.mxu0 0.0
  %593 = vmatpush2.msra.mxu0 0.0
  %594 = vmatprep.subr.mxu0 0.0
  %595 = vmatpush2.msra.mxu0 0.0
  %596 = vmatprep.subr.mxu0 0.0
  %597 = vmatpush2.msra.mxu0 0.0
  %598 = vmatprep.subr.mxu0 0.0
  %599 = vmatpush2.msra.mxu0 0.0
  %600 = vmatprep.subr.mxu0 0.0
  %601 = vmatpush2.msra.mxu0 0.0
  %602 = vmatprep.subr.mxu0 0.0
  %603 = vmatpush2.msra.mxu0 0.0
  %604 = vmatprep.subr.mxu0 0.0
  %605 = vmatpush2.msra.mxu0 0.0
  %606 = vmatprep.subr.mxu0 0.0
  %607 = vmatpush2.msra.mxu0 0.0
  %608 = vmatprep.subr.mxu0 0.0
  %609 = vmatpush2.msra.mxu0 0.0
  %610 = vmatprep.subr.mxu0 0.0
  %611 = vmatpush2.msra.mxu0 0.0
  %612 = vmatprep.subr.mxu0 0.0
  %613 = vmatpush2.msra.mxu0 0.0
  %614 = vmatprep.subr.mxu0 0.0
  %615 = vmatpush2.msra.mxu0 0.0
  %616 = vmatprep.subr.mxu0 0.0
  %617 = vmatpush2.msra.mxu0 0.0
  %618 = vmatprep.mubr.f32.mxu0 0.0
  %619 = vmatmul.mubr.f32.gmra.mxu0 %v552
  %v620 = vpop.f32.mrf.mxu0
  %v621 = vadd.f32 0.0, %v620
  %v622 = vpop.f32.mrf.mxu0
  %623 = vdwg.mxu0
  %v624 = vadd.f32 %v126, %v621
  %v625 = vxor.u32 %v624, 2147483648
  %v626 = vmul.f32 %v625, 1.442695
  %v627 = vpow.pop %v626
  %v628 = vadd.f32 %v627, 1.0
  %v629 = vrcp.pop %v628
  %v630 = vmul.f32 1.0, %v629
  %v631 = vtanh.pop %v624
  %v633 = vrot.slane %v541, 6
  %v635 = vmul.f32 %v630, %v633
  %637 = vrot.lane.b32.xlu0 %v631, 64
  %v638 = vpop.permute.xlu0 %637
  %v640 = vmul.f32 %v630, %v638
  %642 = vrot.lane.b32.xlu0 %v640, 32
  %v643 = vpop.permute.xlu0 %642
  %v645 = vadd.f32 %v635, %v643
  %v646 = vtanh.pop %v645
  %648 = vrot.lane.b32.xlu0 %v646, 64
  %v649 = vpop.permute.xlu0 %648
  %v651 = vmul.f32 %v630, %v649
  %653 = vrot.lane.b32.xlu0 %v651, 32
  %v654 = vpop.permute.xlu0 %653
  %v655 = vsel %vm129, %v654, 0
  %657 = vmatprep.subr.mxu0 0.0
  %658 = vmatpush1.msra.mxu0 0.0
  %659 = vmatprep.subr.mxu0 0.0
  %660 = vmatpush1.msra.mxu0 0.0
  %661 = vmatprep.subr.mxu0 0.0
  %662 = vmatpush1.msra.mxu0 0.0
  %663 = vmatprep.subr.mxu0 0.0
  %664 = vmatpush1.msra.mxu0 0.0
  %665 = vmatprep.subr.mxu0 0.0
  %666 = vmatpush1.msra.mxu0 0.0
  %667 = vmatprep.subr.mxu0 0.0
  %668 = vmatpush1.msra.mxu0 0.0
  %669 = vmatprep.subr.mxu0 0.0
  %670 = vmatpush1.msra.mxu0 0.0
  %671 = vmatprep.subr.mxu0 0.0
  %672 = vmatpush1.msra.mxu0 0.0
  %673 = vmatprep.subr.mxu0 0.0
  %674 = vmatpush1.msra.mxu0 0.0
  %675 = vmatprep.subr.mxu0 0.0
  %676 = vmatpush1.msra.mxu0 0.0
  %677 = vmatprep.subr.mxu0 0.0
  %678 = vmatpush1.msra.mxu0 0.0
  %679 = vmatprep.subr.mxu0 0.0
  %680 = vmatpush1.msra.mxu0 0.0
  %681 = vmatprep.subr.mxu0 0.0
  %682 = vmatpush1.msra.mxu0 %v39
  %683 = vmatprep.subr.mxu0 0.0
  %684 = vmatpush1.msra.mxu0 %v38
  %685 = vmatprep.subr.mxu0 0.0
  %686 = vmatpush1.msra.mxu0 %v37
  %687 = vmatprep.subr.mxu0 0.0
  %688 = vmatpush1.msra.mxu0 %v36
  %689 = vmatprep.subr.mxu0 0.0
  %690 = vmatpush2.msra.mxu0 0.0
  %691 = vmatprep.subr.mxu0 0.0
  %692 = vmatpush2.msra.mxu0 0.0
  %693 = vmatprep.subr.mxu0 0.0
  %694 = vmatpush2.msra.mxu0 0.0
  %695 = vmatprep.subr.mxu0 0.0
  %696 = vmatpush2.msra.mxu0 0.0
  %697 = vmatprep.subr.mxu0 0.0
  %698 = vmatpush2.msra.mxu0 0.0
  %699 = vmatprep.subr.mxu0 0.0
  %700 = vmatpush2.msra.mxu0 0.0
  %701 = vmatprep.subr.mxu0 0.0
  %702 = vmatpush2.msra.mxu0 0.0
  %703 = vmatprep.subr.mxu0 0.0
  %704 = vmatpush2.msra.mxu0 0.0
  %705 = vmatprep.subr.mxu0 0.0
  %706 = vmatpush2.msra.mxu0 0.0
  %707 = vmatprep.subr.mxu0 0.0
  %708 = vmatpush2.msra.mxu0 0.0
  %709 = vmatprep.subr.mxu0 0.0
  %710 = vmatpush2.msra.mxu0 0.0
  %711 = vmatprep.subr.mxu0 0.0
  %712 = vmatpush2.msra.mxu0 0.0
  %713 = vmatprep.subr.mxu0 0.0
  %714 = vmatpush2.msra.mxu0 0.0
  %715 = vmatprep.subr.mxu0 0.0
  %716 = vmatpush2.msra.mxu0 0.0
  %717 = vmatprep.subr.mxu0 0.0
  %718 = vmatpush2.msra.mxu0 0.0
  %719 = vmatprep.subr.mxu0 0.0
  %720 = vmatpush2.msra.mxu0 0.0
  %721 = vmatprep.mubr.f32.mxu0 0.0
  %722 = vmatmul.mubr.f32.gmra.mxu0 %v655
  %v723 = vpop.f32.mrf.mxu0
  %v724 = vadd.f32 0.0, %v723
  %v725 = vpop.f32.mrf.mxu0
  %726 = vdwg.mxu0
  %v728 = vrot.slane %v724, 6
  %v730 = vadd.f32 %v126, %v728
  %v731 = vxor.u32 %v730, 2147483648
  %v732 = vmul.f32 %v731, 1.442695
  %v733 = vpow.pop %v732
  %v734 = vadd.f32 %v733, 1.0
  %v735 = vrcp.pop %v734
  %v736 = vmul.f32 1.0, %v735
  %v737 = vtanh.pop %v730
  %v739 = vrot.slane %v645, 6
  %v741 = vmul.f32 %v736, %v739
  %743 = vrot.lane.b32.xlu0 %v737, 64
  %v744 = vpop.permute.xlu0 %743
  %v746 = vmul.f32 %v736, %v744
  %748 = vrot.lane.b32.xlu0 %v746, 32
  %v749 = vpop.permute.xlu0 %748
  %v751 = vadd.f32 %v741, %v749
  %v752 = vtanh.pop %v751
  %754 = vrot.lane.b32.xlu0 %v752, 64
  %v755 = vpop.permute.xlu0 %754
  %v757 = vmul.f32 %v736, %v755
  %v759 = vrot.slane %v757, 2
  %760 = vrot.lane.b32.xlu0 %v759, 32
  %v761 = vpop.permute.xlu0 %760
  %v762 = vsel %vm129, %v761, 0
  %764 = vmatprep.subr.mxu0 0.0
  %765 = vmatpush1.msra.mxu0 0.0
  %766 = vmatprep.subr.mxu0 0.0
  %767 = vmatpush1.msra.mxu0 0.0
  %768 = vmatprep.subr.mxu0 0.0
  %769 = vmatpush1.msra.mxu0 0.0
  %770 = vmatprep.subr.mxu0 0.0
  %771 = vmatpush1.msra.mxu0 0.0
  %772 = vmatprep.subr.mxu0 0.0
  %773 = vmatpush1.msra.mxu0 0.0
  %774 = vmatprep.subr.mxu0 0.0
  %775 = vmatpush1.msra.mxu0 0.0
  %776 = vmatprep.subr.mxu0 0.0
  %777 = vmatpush1.msra.mxu0 0.0
  %778 = vmatprep.subr.mxu0 0.0
  %779 = vmatpush1.msra.mxu0 0.0
  %780 = vmatprep.subr.mxu0 0.0
  %781 = vmatpush1.msra.mxu0 0.0
  %782 = vmatprep.subr.mxu0 0.0
  %783 = vmatpush1.msra.mxu0 0.0
  %784 = vmatprep.subr.mxu0 0.0
  %785 = vmatpush1.msra.mxu0 0.0
  %786 = vmatprep.subr.mxu0 0.0
  %787 = vmatpush1.msra.mxu0 0.0
  %788 = vmatprep.subr.mxu0 0.0
  %789 = vmatpush1.msra.mxu0 %v39
  %790 = vmatprep.subr.mxu0 0.0
  %791 = vmatpush1.msra.mxu0 %v38
  %792 = vmatprep.subr.mxu0 0.0
  %793 = vmatpush1.msra.mxu0 %v37
  %794 = vmatprep.subr.mxu0 0.0
  %795 = vmatpush1.msra.mxu0 %v36
  %796 = vmatprep.subr.mxu0 0.0
  %797 = vmatpush2.msra.mxu0 0.0
  %798 = vmatprep.subr.mxu0 0.0
  %799 = vmatpush2.msra.mxu0 0.0
  %800 = vmatprep.subr.mxu0 0.0
  %801 = vmatpush2.msra.mxu0 0.0
  %802 = vmatprep.subr.mxu0 0.0
  %803 = vmatpush2.msra.mxu0 0.0
  %804 = vmatprep.subr.mxu0 0.0
  %805 = vmatpush2.msra.mxu0 0.0
  %806 = vmatprep.subr.mxu0 0.0
  %807 = vmatpush2.msra.mxu0 0.0
  %808 = vmatprep.subr.mxu0 0.0
  %809 = vmatpush2.msra.mxu0 0.0
  %810 = vmatprep.subr.mxu0 0.0
  %811 = vmatpush2.msra.mxu0 0.0
  %812 = vmatprep.subr.mxu0 0.0
  %813 = vmatpush2.msra.mxu0 0.0
  %814 = vmatprep.subr.mxu0 0.0
  %815 = vmatpush2.msra.mxu0 0.0
  %816 = vmatprep.subr.mxu0 0.0
  %817 = vmatpush2.msra.mxu0 0.0
  %818 = vmatprep.subr.mxu0 0.0
  %819 = vmatpush2.msra.mxu0 0.0
  %820 = vmatprep.subr.mxu0 0.0
  %821 = vmatpush2.msra.mxu0 0.0
  %822 = vmatprep.subr.mxu0 0.0
  %823 = vmatpush2.msra.mxu0 0.0
  %824 = vmatprep.subr.mxu0 0.0
  %825 = vmatpush2.msra.mxu0 0.0
  %826 = vmatprep.subr.mxu0 0.0
  %827 = vmatpush2.msra.mxu0 0.0
  %828 = vmatprep.mubr.f32.mxu0 0.0
  %829 = vmatmul.mubr.f32.gmra.mxu0 %v762
  %v830 = vpop.f32.mrf.mxu0
  %v831 = vadd.f32 0.0, %v830
  %v832 = vpop.f32.mrf.mxu0
  %833 = vdwg.mxu0
  %v835 = vrot.slane %v831, 4
  %v837 = vadd.f32 %v126, %v835
  %v838 = vxor.u32 %v837, 2147483648
  %v839 = vmul.f32 %v838, 1.442695
  %v840 = vpow.pop %v839
  %v841 = vadd.f32 %v840, 1.0
  %v842 = vrcp.pop %v841
  %v843 = vmul.f32 1.0, %v842
  %v844 = vtanh.pop %v837
  %v846 = vrot.slane %v751, 6
  %v848 = vmul.f32 %v843, %v846
  %850 = vrot.lane.b32.xlu0 %v844, 64
  %v851 = vpop.permute.xlu0 %850
  %v853 = vmul.f32 %v843, %v851
  %855 = vrot.lane.b32.xlu0 %v853, 32
  %v856 = vpop.permute.xlu0 %855
  %v858 = vadd.f32 %v848, %v856
  %v859 = vtanh.pop %v858
  %861 = vrot.lane.b32.xlu0 %v859, 64
  %v862 = vpop.permute.xlu0 %861
  %v864 = vmul.f32 %v843, %v862
  %v866 = vrot.slane %v864, 4
  %867 = vrot.lane.b32.xlu0 %v866, 32
  %v868 = vpop.permute.xlu0 %867
  %v869 = vsel %vm129, %v868, 0
  %871 = vmatprep.subr.mxu0 0.0
  %872 = vmatpush1.msra.mxu0 0.0
  %873 = vmatprep.subr.mxu0 0.0
  %874 = vmatpush1.msra.mxu0 0.0
  %875 = vmatprep.subr.mxu0 0.0
  %876 = vmatpush1.msra.mxu0 0.0
  %877 = vmatprep.subr.mxu0 0.0
  %878 = vmatpush1.msra.mxu0 0.0
  %879 = vmatprep.subr.mxu0 0.0
  %880 = vmatpush1.msra.mxu0 0.0
  %881 = vmatprep.subr.mxu0 0.0
  %882 = vmatpush1.msra.mxu0 0.0
  %883 = vmatprep.subr.mxu0 0.0
  %884 = vmatpush1.msra.mxu0 0.0
  %885 = vmatprep.subr.mxu0 0.0
  %886 = vmatpush1.msra.mxu0 0.0
  %887 = vmatprep.subr.mxu0 0.0
  %888 = vmatpush1.msra.mxu0 0.0
  %889 = vmatprep.subr.mxu0 0.0
  %890 = vmatpush1.msra.mxu0 0.0
  %891 = vmatprep.subr.mxu0 0.0
  %892 = vmatpush1.msra.mxu0 0.0
  %893 = vmatprep.subr.mxu0 0.0
  %894 = vmatpush1.msra.mxu0 0.0
  %895 = vmatprep.subr.mxu0 0.0
  %896 = vmatpush1.msra.mxu0 %v39
  %897 = vmatprep.subr.mxu0 0.0
  %898 = vmatpush1.msra.mxu0 %v38
  %899 = vmatprep.subr.mxu0 0.0
  %900 = vmatpush1.msra.mxu0 %v37
  %901 = vmatprep.subr.mxu0 0.0
  %902 = vmatpush1.msra.mxu0 %v36
  %903 = vmatprep.subr.mxu0 0.0
  %904 = vmatpush2.msra.mxu0 0.0
  %905 = vmatprep.subr.mxu0 0.0
  %906 = vmatpush2.msra.mxu0 0.0
  %907 = vmatprep.subr.mxu0 0.0
  %908 = vmatpush2.msra.mxu0 0.0
  %909 = vmatprep.subr.mxu0 0.0
  %910 = vmatpush2.msra.mxu0 0.0
  %911 = vmatprep.subr.mxu0 0.0
  %912 = vmatpush2.msra.mxu0 0.0
  %913 = vmatprep.subr.mxu0 0.0
  %914 = vmatpush2.msra.mxu0 0.0
  %915 = vmatprep.subr.mxu0 0.0
  %916 = vmatpush2.msra.mxu0 0.0
  %917 = vmatprep.subr.mxu0 0.0
  %918 = vmatpush2.msra.mxu0 0.0
  %919 = vmatprep.subr.mxu0 0.0
  %920 = vmatpush2.msra.mxu0 0.0
  %921 = vmatprep.subr.mxu0 0.0
  %922 = vmatpush2.msra.mxu0 0.0
  %923 = vmatprep.subr.mxu0 0.0
  %924 = vmatpush2.msra.mxu0 0.0
  %925 = vmatprep.subr.mxu0 0.0
  %926 = vmatpush2.msra.mxu0 0.0
  %927 = vmatprep.subr.mxu0 0.0
  %928 = vmatpush2.msra.mxu0 0.0
  %929 = vmatprep.subr.mxu0 0.0
  %930 = vmatpush2.msra.mxu0 0.0
  %931 = vmatprep.subr.mxu0 0.0
  %932 = vmatpush2.msra.mxu0 0.0
  %933 = vmatprep.subr.mxu0 0.0
  %934 = vmatpush2.msra.mxu0 0.0
  %935 = vmatprep.mubr.f32.mxu0 0.0
  %936 = vmatmul.mubr.f32.gmra.mxu0 %v869
  %v937 = vpop.f32.mrf.mxu0
  %v938 = vadd.f32 0.0, %v937
  %v939 = vpop.f32.mrf.mxu0
  %940 = vdwg.mxu0
  %v942 = vrot.slane %v938, 2
  %v944 = vadd.f32 %v126, %v942
  %v945 = vxor.u32 %v944, 2147483648
  %v946 = vmul.f32 %v945, 1.442695
  %v947 = vpow.pop %v946
  %v948 = vadd.f32 %v947, 1.0
  %v949 = vrcp.pop %v948
  %v950 = vmul.f32 1.0, %v949
  %v951 = vtanh.pop %v944
  %v953 = vrot.slane %v858, 6
  %v955 = vmul.f32 %v950, %v953
  %957 = vrot.lane.b32.xlu0 %v951, 64
  %v958 = vpop.permute.xlu0 %957
  %v960 = vmul.f32 %v950, %v958
  %962 = vrot.lane.b32.xlu0 %v960, 32
  %v963 = vpop.permute.xlu0 %962
  %v965 = vadd.f32 %v955, %v963
  %v966 = vtanh.pop %v965
  %968 = vrot.lane.b32.xlu0 %v966, 64
  %v969 = vpop.permute.xlu0 %968
  %v971 = vmul.f32 %v950, %v969
  %vm972 = vcmask 1041408
  %v973 = vsel %vm972, %v227, %v333
  %vm974 = vcmask 1043456
  %v975 = vsel %vm974, %v973, %v440
  %vm976 = vcmask 1045504
  %v977 = vsel %vm976, %v975, %v547
  %v978 = vsel %vm972, %v651, %v757
  %v979 = vsel %vm974, %v978, %v864
  %v980 = vsel %vm976, %v979, %v971
  %v981 = vld [vmem:[%s4] sm:$0xff]
  %v982 = vld [vmem:[%s4 + $0x8] sm:$0xff]
  %v983 = vld [vmem:[%s4 + $0x10] sm:$0xff]
  %v984 = vld [vmem:[%s4 + $0x18] sm:$0xff]
  %v985 = vld [vmem:[%s5] sm:$0xff]
  %v986 = vld [vmem:[%s5 + $0x8] sm:$0xff]
  %v987 = vld [vmem:[%s5 + $0x10] sm:$0xff]
  %v988 = vld [vmem:[%s5 + $0x18] sm:$0xff]
  %v989 = vld [vmem:[%s6] sm:$0x1]
  %v991 = vlaneseq
  %v992 = vshrl.u32 %v991, 7
  %v993 = vsub.s32 0, %v992
  %v994 = vrot.slane %v989, %v993
  %998 = vrot.lane.b32.xlu0 %v977, 32
  %v999 = vpop.permute.xlu0 %998
  %1000 = vrot.lane.b32.xlu0 %v980, 32
  %v1001 = vpop.permute.xlu0 %1000
  %v1002 = vsel %vm129, %v999, 0
  %v1004 = vsel %vm129, %v1001, 0
  %1006 = vmatprep.subr.mxu0 0.0
  %1007 = vmatpush1.msra.mxu0 0.0
  %1008 = vmatprep.subr.mxu0 0.0
  %1009 = vmatpush1.msra.mxu0 0.0
  %1010 = vmatprep.subr.mxu0 0.0
  %1011 = vmatpush1.msra.mxu0 0.0
  %1012 = vmatprep.subr.mxu0 0.0
  %1013 = vmatpush1.msra.mxu0 0.0
  %1014 = vmatprep.subr.mxu0 0.0
  %1015 = vmatpush1.msra.mxu0 0.0
  %1016 = vmatprep.subr.mxu0 0.0
  %1017 = vmatpush1.msra.mxu0 0.0
  %1018 = vmatprep.subr.mxu0 0.0
  %1019 = vmatpush1.msra.mxu0 0.0
  %1020 = vmatprep.subr.mxu0 0.0
  %1021 = vmatpush1.msra.mxu0 0.0
  %1022 = vmatprep.subr.mxu0 0.0
  %1023 = vmatpush1.msra.mxu0 0.0
  %1024 = vmatprep.subr.mxu0 0.0
  %1025 = vmatpush1.msra.mxu0 0.0
  %1026 = vmatprep.subr.mxu0 0.0
  %1027 = vmatpush1.msra.mxu0 0.0
  %1028 = vmatprep.subr.mxu0 0.0
  %1029 = vmatpush1.msra.mxu0 0.0
  %1030 = vmatprep.subr.mxu0 0.0
  %1031 = vmatpush1.msra.mxu0 %v984
  %1032 = vmatprep.subr.mxu0 0.0
  %1033 = vmatpush1.msra.mxu0 %v983
  %1034 = vmatprep.subr.mxu0 0.0
  %1035 = vmatpush1.msra.mxu0 %v982
  %1036 = vmatprep.subr.mxu0 0.0
  %1037 = vmatpush1.msra.mxu0 %v981
  %1038 = vmatprep.subr.mxu0 0.0
  %1039 = vmatpush2.msra.mxu0 0.0
  %1040 = vmatprep.subr.mxu0 0.0
  %1041 = vmatpush2.msra.mxu0 0.0
  %1042 = vmatprep.subr.mxu0 0.0
  %1043 = vmatpush2.msra.mxu0 0.0
  %1044 = vmatprep.subr.mxu0 0.0
  %1045 = vmatpush2.msra.mxu0 0.0
  %1046 = vmatprep.subr.mxu0 0.0
  %1047 = vmatpush2.msra.mxu0 0.0
  %1048 = vmatprep.subr.mxu0 0.0
  %1049 = vmatpush2.msra.mxu0 0.0
  %1050 = vmatprep.subr.mxu0 0.0
  %1051 = vmatpush2.msra.mxu0 0.0
  %1052 = vmatprep.subr.mxu0 0.0
  %1053 = vmatpush2.msra.mxu0 0.0
  %1054 = vmatprep.subr.mxu0 0.0
  %1055 = vmatpush2.msra.mxu0 0.0
  %1056 = vmatprep.subr.mxu0 0.0
  %1057 = vmatpush2.msra.mxu0 0.0
  %1058 = vmatprep.subr.mxu0 0.0
  %1059 = vmatpush2.msra.mxu0 0.0
  %1060 = vmatprep.subr.mxu0 0.0
  %1061 = vmatpush2.msra.mxu0 0.0
  %1062 = vmatprep.subr.mxu0 0.0
  %1063 = vmatpush2.msra.mxu0 0.0
  %1064 = vmatprep.subr.mxu0 0.0
  %1065 = vmatpush2.msra.mxu0 0.0
  %1066 = vmatprep.subr.mxu0 0.0
  %1067 = vmatpush2.msra.mxu0 0.0
  %1068 = vmatprep.subr.mxu0 0.0
  %1069 = vmatpush2.msra.mxu0 0.0
  %1070 = vmatprep.mubr.f32.mxu0 0.0
  %1071 = vmatmul.mubr.f32.gmra.mxu0 %v1002
  %v1072 = vpop.f32.mrf.mxu0
  %v1073 = vadd.f32 %v994, %v1072
  %v1074 = vpop.f32.mrf.mxu0
  %1075 = vmatprep.mubr.f32.mxu0 0.0
  %1076 = vmatmul.mubr.f32.gmra.mxu0 %v1004
  %v1077 = vpop.f32.mrf.mxu0
  %v1078 = vadd.f32 %v994, %v1077
  %v1079 = vpop.f32.mrf.mxu0
  %1080 = vdwg.mxu0
  %1081 = vmatprep.subr.mxu0 0.0
  %1082 = vmatpush1.msra.mxu0 0.0
  %1083 = vmatprep.subr.mxu0 0.0
  %1084 = vmatpush1.msra.mxu0 0.0
  %1085 = vmatprep.subr.mxu0 0.0
  %1086 = vmatpush1.msra.mxu0 0.0
  %1087 = vmatprep.subr.mxu0 0.0
  %1088 = vmatpush1.msra.mxu0 0.0
  %1089 = vmatprep.subr.mxu0 0.0
  %1090 = vmatpush1.msra.mxu0 0.0
  %1091 = vmatprep.subr.mxu0 0.0
  %1092 = vmatpush1.msra.mxu0 0.0
  %1093 = vmatprep.subr.mxu0 0.0
  %1094 = vmatpush1.msra.mxu0 0.0
  %1095 = vmatprep.subr.mxu0 0.0
  %1096 = vmatpush1.msra.mxu0 0.0
  %1097 = vmatprep.subr.mxu0 0.0
  %1098 = vmatpush1.msra.mxu0 0.0
  %1099 = vmatprep.subr.mxu0 0.0
  %1100 = vmatpush1.msra.mxu0 0.0
  %1101 = vmatprep.subr.mxu0 0.0
  %1102 = vmatpush1.msra.mxu0 0.0
  %1103 = vmatprep.subr.mxu0 0.0
  %1104 = vmatpush1.msra.mxu0 0.0
  %1105 = vmatprep.subr.mxu0 0.0
  %1106 = vmatpush1.msra.mxu0 %v988
  %1107 = vmatprep.subr.mxu0 0.0
  %1108 = vmatpush1.msra.mxu0 %v987
  %1109 = vmatprep.subr.mxu0 0.0
  %1110 = vmatpush1.msra.mxu0 %v986
  %1111 = vmatprep.subr.mxu0 0.0
  %1112 = vmatpush1.msra.mxu0 %v985
  %1113 = vmatprep.subr.mxu0 0.0
  %1114 = vmatpush2.msra.mxu0 0.0
  %1115 = vmatprep.subr.mxu0 0.0
  %1116 = vmatpush2.msra.mxu0 0.0
  %1117 = vmatprep.subr.mxu0 0.0
  %1118 = vmatpush2.msra.mxu0 0.0
  %1119 = vmatprep.subr.mxu0 0.0
  %1120 = vmatpush2.msra.mxu0 0.0
  %1121 = vmatprep.subr.mxu0 0.0
  %1122 = vmatpush2.msra.mxu0 0.0
  %1123 = vmatprep.subr.mxu0 0.0
  %1124 = vmatpush2.msra.mxu0 0.0
  %1125 = vmatprep.subr.mxu0 0.0
  %1126 = vmatpush2.msra.mxu0 0.0
  %1127 = vmatprep.subr.mxu0 0.0
  %1128 = vmatpush2.msra.mxu0 0.0
  %1129 = vmatprep.subr.mxu0 0.0
  %1130 = vmatpush2.msra.mxu0 0.0
  %1131 = vmatprep.subr.mxu0 0.0
  %1132 = vmatpush2.msra.mxu0 0.0
  %1133 = vmatprep.subr.mxu0 0.0
  %1134 = vmatpush2.msra.mxu0 0.0
  %1135 = vmatprep.subr.mxu0 0.0
  %1136 = vmatpush2.msra.mxu0 0.0
  %1137 = vmatprep.subr.mxu0 0.0
  %1138 = vmatpush2.msra.mxu0 0.0
  %1139 = vmatprep.subr.mxu0 0.0
  %1140 = vmatpush2.msra.mxu0 0.0
  %1141 = vmatprep.subr.mxu0 0.0
  %1142 = vmatpush2.msra.mxu0 0.0
  %1143 = vmatprep.subr.mxu0 0.0
  %1144 = vmatpush2.msra.mxu0 0.0
  %1145 = vmatprep.mubr.f32.mxu0 0.0
  %1146 = vmatmul.mubr.f32.gmra.mxu0 %v131
  %v1147 = vpop.f32.mrf.mxu0
  %v1148 = vadd.f32 0.0, %v1147
  %v1149 = vpop.f32.mrf.mxu0
  %1150 = vdwg.mxu0
  %v1151 = vadd.f32 %v1073, %v1148
  %v1152 = vxor.u32 %v1151, 2147483648
  %v1153 = vmul.f32 %v1152, 1.442695
  %v1154 = vpow.pop %v1153
  %v1155 = vadd.f32 %v1154, 1.0
  %v1156 = vrcp.pop %v1155
  %v1157 = vmul.f32 1.0, %v1156
  %v1158 = vtanh.pop %v1151
  %v1159 = vmul.f32 %v1157, 0.0
  %1161 = vrot.lane.b32.xlu0 %v1158, 64
  %v1162 = vpop.permute.xlu0 %1161
  %v1164 = vmul.f32 %v1157, %v1162
  %1166 = vrot.lane.b32.xlu0 %v1164, 32
  %v1167 = vpop.permute.xlu0 %1166
  %v1169 = vadd.f32 %v1159, %v1167
  %v1170 = vtanh.pop %v1169
  %1172 = vrot.lane.b32.xlu0 %v1170, 64
  %v1173 = vpop.permute.xlu0 %1172
  %v1175 = vmul.f32 %v1157, %v1173
  %1177 = vrot.lane.b32.xlu0 %v1175, 32
  %v1178 = vpop.permute.xlu0 %1177
  %v1179 = vsel %vm129, %v1178, 0
  %1181 = vmatprep.subr.mxu0 0.0
  %1182 = vmatpush1.msra.mxu0 0.0
  %1183 = vmatprep.subr.mxu0 0.0
  %1184 = vmatpush1.msra.mxu0 0.0
  %1185 = vmatprep.subr.mxu0 0.0
  %1186 = vmatpush1.msra.mxu0 0.0
  %1187 = vmatprep.subr.mxu0 0.0
  %1188 = vmatpush1.msra.mxu0 0.0
  %1189 = vmatprep.subr.mxu0 0.0
  %1190 = vmatpush1.msra.mxu0 0.0
  %1191 = vmatprep.subr.mxu0 0.0
  %1192 = vmatpush1.msra.mxu0 0.0
  %1193 = vmatprep.subr.mxu0 0.0
  %1194 = vmatpush1.msra.mxu0 0.0
  %1195 = vmatprep.subr.mxu0 0.0
  %1196 = vmatpush1.msra.mxu0 0.0
  %1197 = vmatprep.subr.mxu0 0.0
  %1198 = vmatpush1.msra.mxu0 0.0
  %1199 = vmatprep.subr.mxu0 0.0
  %1200 = vmatpush1.msra.mxu0 0.0
  %1201 = vmatprep.subr.mxu0 0.0
  %1202 = vmatpush1.msra.mxu0 0.0
  %1203 = vmatprep.subr.mxu0 0.0
  %1204 = vmatpush1.msra.mxu0 0.0
  %1205 = vmatprep.subr.mxu0 0.0
  %1206 = vmatpush1.msra.mxu0 %v988
  %1207 = vmatprep.subr.mxu0 0.0
  %1208 = vmatpush1.msra.mxu0 %v987
  %1209 = vmatprep.subr.mxu0 0.0
  %1210 = vmatpush1.msra.mxu0 %v986
  %1211 = vmatprep.subr.mxu0 0.0
  %1212 = vmatpush1.msra.mxu0 %v985
  %1213 = vmatprep.subr.mxu0 0.0
  %1214 = vmatpush2.msra.mxu0 0.0
  %1215 = vmatprep.subr.mxu0 0.0
  %1216 = vmatpush2.msra.mxu0 0.0
  %1217 = vmatprep.subr.mxu0 0.0
  %1218 = vmatpush2.msra.mxu0 0.0
  %1219 = vmatprep.subr.mxu0 0.0
  %1220 = vmatpush2.msra.mxu0 0.0
  %1221 = vmatprep.subr.mxu0 0.0
  %1222 = vmatpush2.msra.mxu0 0.0
  %1223 = vmatprep.subr.mxu0 0.0
  %1224 = vmatpush2.msra.mxu0 0.0
  %1225 = vmatprep.subr.mxu0 0.0
  %1226 = vmatpush2.msra.mxu0 0.0
  %1227 = vmatprep.subr.mxu0 0.0
  %1228 = vmatpush2.msra.mxu0 0.0
  %1229 = vmatprep.subr.mxu0 0.0
  %1230 = vmatpush2.msra.mxu0 0.0
  %1231 = vmatprep.subr.mxu0 0.0
  %1232 = vmatpush2.msra.mxu0 0.0
  %1233 = vmatprep.subr.mxu0 0.0
  %1234 = vmatpush2.msra.mxu0 0.0
  %1235 = vmatprep.subr.mxu0 0.0
  %1236 = vmatpush2.msra.mxu0 0.0
  %1237 = vmatprep.subr.mxu0 0.0
  %1238 = vmatpush2.msra.mxu0 0.0
  %1239 = vmatprep.subr.mxu0 0.0
  %1240 = vmatpush2.msra.mxu0 0.0
  %1241 = vmatprep.subr.mxu0 0.0
  %1242 = vmatpush2.msra.mxu0 0.0
  %1243 = vmatprep.subr.mxu0 0.0
  %1244 = vmatpush2.msra.mxu0 0.0
  %1245 = vmatprep.mubr.f32.mxu0 0.0
  %1246 = vmatmul.mubr.f32.gmra.mxu0 %v1179
  %v1247 = vpop.f32.mrf.mxu0
  %v1248 = vadd.f32 0.0, %v1247
  %v1249 = vpop.f32.mrf.mxu0
  %1250 = vdwg.mxu0
  %v1252 = vrot.slane %v1248, 6
  %v1254 = vadd.f32 %v1073, %v1252
  %v1255 = vxor.u32 %v1254, 2147483648
  %v1256 = vmul.f32 %v1255, 1.442695
  %v1257 = vpow.pop %v1256
  %v1258 = vadd.f32 %v1257, 1.0
  %v1259 = vrcp.pop %v1258
  %v1260 = vmul.f32 1.0, %v1259
  %v1261 = vtanh.pop %v1254
  %v1263 = vrot.slane %v1169, 6
  %v1265 = vmul.f32 %v1260, %v1263
  %1267 = vrot.lane.b32.xlu0 %v1261, 64
  %v1268 = vpop.permute.xlu0 %1267
  %v1270 = vmul.f32 %v1260, %v1268
  %1272 = vrot.lane.b32.xlu0 %v1270, 32
  %v1273 = vpop.permute.xlu0 %1272
  %v1275 = vadd.f32 %v1265, %v1273
  %v1276 = vtanh.pop %v1275
  %1278 = vrot.lane.b32.xlu0 %v1276, 64
  %v1279 = vpop.permute.xlu0 %1278
  %v1281 = vmul.f32 %v1260, %v1279
  %v1283 = vrot.slane %v1281, 2
  %1284 = vrot.lane.b32.xlu0 %v1283, 32
  %v1285 = vpop.permute.xlu0 %1284
  %v1286 = vsel %vm129, %v1285, 0
  %1288 = vmatprep.subr.mxu0 0.0
  %1289 = vmatpush1.msra.mxu0 0.0
  %1290 = vmatprep.subr.mxu0 0.0
  %1291 = vmatpush1.msra.mxu0 0.0
  %1292 = vmatprep.subr.mxu0 0.0
  %1293 = vmatpush1.msra.mxu0 0.0
  %1294 = vmatprep.subr.mxu0 0.0
  %1295 = vmatpush1.msra.mxu0 0.0
  %1296 = vmatprep.subr.mxu0 0.0
  %1297 = vmatpush1.msra.mxu0 0.0
  %1298 = vmatprep.subr.mxu0 0.0
  %1299 = vmatpush1.msra.mxu0 0.0
  %1300 = vmatprep.subr.mxu0 0.0
  %1301 = vmatpush1.msra.mxu0 0.0
  %1302 = vmatprep.subr.mxu0 0.0
  %1303 = vmatpush1.msra.mxu0 0.0
  %1304 = vmatprep.subr.mxu0 0.0
  %1305 = vmatpush1.msra.mxu0 0.0
  %1306 = vmatprep.subr.mxu0 0.0
  %1307 = vmatpush1.msra.mxu0 0.0
  %1308 = vmatprep.subr.mxu0 0.0
  %1309 = vmatpush1.msra.mxu0 0.0
  %1310 = vmatprep.subr.mxu0 0.0
  %1311 = vmatpush1.msra.mxu0 0.0
  %1312 = vmatprep.subr.mxu0 0.0
  %1313 = vmatpush1.msra.mxu0 %v988
  %1314 = vmatprep.subr.mxu0 0.0
  %1315 = vmatpush1.msra.mxu0 %v987
  %1316 = vmatprep.subr.mxu0 0.0
  %1317 = vmatpush1.msra.mxu0 %v986
  %1318 = vmatprep.subr.mxu0 0.0
  %1319 = vmatpush1.msra.mxu0 %v985
  %1320 = vmatprep.subr.mxu0 0.0
  %1321 = vmatpush2.msra.mxu0 0.0
  %1322 = vmatprep.subr.mxu0 0.0
  %1323 = vmatpush2.msra.mxu0 0.0
  %1324 = vmatprep.subr.mxu0 0.0
  %1325 = vmatpush2.msra.mxu0 0.0
  %1326 = vmatprep.subr.mxu0 0.0
  %1327 = vmatpush2.msra.mxu0 0.0
  %1328 = vmatprep.subr.mxu0 0.0
  %1329 = vmatpush2.msra.mxu0 0.0
  %1330 = vmatprep.subr.mxu0 0.0
  %1331 = vmatpush2.msra.mxu0 0.0
  %1332 = vmatprep.subr.mxu0 0.0
  %1333 = vmatpush2.msra.mxu0 0.0
  %1334 = vmatprep.subr.mxu0 0.0
  %1335 = vmatpush2.msra.mxu0 0.0
  %1336 = vmatprep.subr.mxu0 0.0
  %1337 = vmatpush2.msra.mxu0 0.0
  %1338 = vmatprep.subr.mxu0 0.0
  %1339 = vmatpush2.msra.mxu0 0.0
  %1340 = vmatprep.subr.mxu0 0.0
  %1341 = vmatpush2.msra.mxu0 0.0
  %1342 = vmatprep.subr.mxu0 0.0
  %1343 = vmatpush2.msra.mxu0 0.0
  %1344 = vmatprep.subr.mxu0 0.0
  %1345 = vmatpush2.msra.mxu0 0.0
  %1346 = vmatprep.subr.mxu0 0.0
  %1347 = vmatpush2.msra.mxu0 0.0
  %1348 = vmatprep.subr.mxu0 0.0
  %1349 = vmatpush2.msra.mxu0 0.0
  %1350 = vmatprep.subr.mxu0 0.0
  %1351 = vmatpush2.msra.mxu0 0.0
  %1352 = vmatprep.mubr.f32.mxu0 0.0
  %1353 = vmatmul.mubr.f32.gmra.mxu0 %v1286
  %v1354 = vpop.f32.mrf.mxu0
  %v1355 = vadd.f32 0.0, %v1354
  %v1356 = vpop.f32.mrf.mxu0
  %1357 = vdwg.mxu0
  %v1359 = vrot.slane %v1355, 4
  %v1361 = vadd.f32 %v1073, %v1359
  %v1362 = vxor.u32 %v1361, 2147483648
  %v1363 = vmul.f32 %v1362, 1.442695
  %v1364 = vpow.pop %v1363
  %v1365 = vadd.f32 %v1364, 1.0
  %v1366 = vrcp.pop %v1365
  %v1367 = vmul.f32 1.0, %v1366
  %v1368 = vtanh.pop %v1361
  %v1370 = vrot.slane %v1275, 6
  %v1372 = vmul.f32 %v1367, %v1370
  %1374 = vrot.lane.b32.xlu0 %v1368, 64
  %v1375 = vpop.permute.xlu0 %1374
  %v1377 = vmul.f32 %v1367, %v1375
  %1379 = vrot.lane.b32.xlu0 %v1377, 32
  %v1380 = vpop.permute.xlu0 %1379
  %v1382 = vadd.f32 %v1372, %v1380
  %v1383 = vtanh.pop %v1382
  %1385 = vrot.lane.b32.xlu0 %v1383, 64
  %v1386 = vpop.permute.xlu0 %1385
  %v1388 = vmul.f32 %v1367, %v1386
  %v1390 = vrot.slane %v1388, 4
  %1391 = vrot.lane.b32.xlu0 %v1390, 32
  %v1392 = vpop.permute.xlu0 %1391
  %v1393 = vsel %vm129, %v1392, 0
  %1395 = vmatprep.subr.mxu0 0.0
  %1396 = vmatpush1.msra.mxu0 0.0
  %1397 = vmatprep.subr.mxu0 0.0
  %1398 = vmatpush1.msra.mxu0 0.0
  %1399 = vmatprep.subr.mxu0 0.0
  %1400 = vmatpush1.msra.mxu0 0.0
  %1401 = vmatprep.subr.mxu0 0.0
  %1402 = vmatpush1.msra.mxu0 0.0
  %1403 = vmatprep.subr.mxu0 0.0
  %1404 = vmatpush1.msra.mxu0 0.0
  %1405 = vmatprep.subr.mxu0 0.0
  %1406 = vmatpush1.msra.mxu0 0.0
  %1407 = vmatprep.subr.mxu0 0.0
  %1408 = vmatpush1.msra.mxu0 0.0
  %1409 = vmatprep.subr.mxu0 0.0
  %1410 = vmatpush1.msra.mxu0 0.0
  %1411 = vmatprep.subr.mxu0 0.0
  %1412 = vmatpush1.msra.mxu0 0.0
  %1413 = vmatprep.subr.mxu0 0.0
  %1414 = vmatpush1.msra.mxu0 0.0
  %1415 = vmatprep.subr.mxu0 0.0
  %1416 = vmatpush1.msra.mxu0 0.0
  %1417 = vmatprep.subr.mxu0 0.0
  %1418 = vmatpush1.msra.mxu0 0.0
  %1419 = vmatprep.subr.mxu0 0.0
  %1420 = vmatpush1.msra.mxu0 %v988
  %1421 = vmatprep.subr.mxu0 0.0
  %1422 = vmatpush1.msra.mxu0 %v987
  %1423 = vmatprep.subr.mxu0 0.0
  %1424 = vmatpush1.msra.mxu0 %v986
  %1425 = vmatprep.subr.mxu0 0.0
  %1426 = vmatpush1.msra.mxu0 %v985
  %1427 = vmatprep.subr.mxu0 0.0
  %1428 = vmatpush2.msra.mxu0 0.0
  %1429 = vmatprep.subr.mxu0 0.0
  %1430 = vmatpush2.msra.mxu0 0.0
  %1431 = vmatprep.subr.mxu0 0.0
  %1432 = vmatpush2.msra.mxu0 0.0
  %1433 = vmatprep.subr.mxu0 0.0
  %1434 = vmatpush2.msra.mxu0 0.0
  %1435 = vmatprep.subr.mxu0 0.0
  %1436 = vmatpush2.msra.mxu0 0.0
  %1437 = vmatprep.subr.mxu0 0.0
  %1438 = vmatpush2.msra.mxu0 0.0
  %1439 = vmatprep.subr.mxu0 0.0
  %1440 = vmatpush2.msra.mxu0 0.0
  %1441 = vmatprep.subr.mxu0 0.0
  %1442 = vmatpush2.msra.mxu0 0.0
  %1443 = vmatprep.subr.mxu0 0.0
  %1444 = vmatpush2.msra.mxu0 0.0
  %1445 = vmatprep.subr.mxu0 0.0
  %1446 = vmatpush2.msra.mxu0 0.0
  %1447 = vmatprep.subr.mxu0 0.0
  %1448 = vmatpush2.msra.mxu0 0.0
  %1449 = vmatprep.subr.mxu0 0.0
  %1450 = vmatpush2.msra.mxu0 0.0
  %1451 = vmatprep.subr.mxu0 0.0
  %1452 = vmatpush2.msra.mxu0 0.0
  %1453 = vmatprep.subr.mxu0 0.0
  %1454 = vmatpush2.msra.mxu0 0.0
  %1455 = vmatprep.subr.mxu0 0.0
  %1456 = vmatpush2.msra.mxu0 0.0
  %1457 = vmatprep.subr.mxu0 0.0
  %1458 = vmatpush2.msra.mxu0 0.0
  %1459 = vmatprep.mubr.f32.mxu0 0.0
  %1460 = vmatmul.mubr.f32.gmra.mxu0 %v1393
  %v1461 = vpop.f32.mrf.mxu0
  %v1462 = vadd.f32 0.0, %v1461
  %v1463 = vpop.f32.mrf.mxu0
  %1464 = vdwg.mxu0
  %v1466 = vrot.slane %v1462, 2
  %v1468 = vadd.f32 %v1073, %v1466
  %v1469 = vxor.u32 %v1468, 2147483648
  %v1470 = vmul.f32 %v1469, 1.442695
  %v1471 = vpow.pop %v1470
  %v1472 = vadd.f32 %v1471, 1.0
  %v1473 = vrcp.pop %v1472
  %v1474 = vmul.f32 1.0, %v1473
  %v1475 = vtanh.pop %v1468
  %v1477 = vrot.slane %v1382, 6
  %v1479 = vmul.f32 %v1474, %v1477
  %1481 = vrot.lane.b32.xlu0 %v1475, 64
  %v1482 = vpop.permute.xlu0 %1481
  %v1484 = vmul.f32 %v1474, %v1482
  %1486 = vrot.lane.b32.xlu0 %v1484, 32
  %v1487 = vpop.permute.xlu0 %1486
  %v1489 = vadd.f32 %v1479, %v1487
  %v1490 = vtanh.pop %v1489
  %1492 = vrot.lane.b32.xlu0 %v1490, 64
  %v1493 = vpop.permute.xlu0 %1492
  %v1495 = vmul.f32 %v1474, %v1493
  %v1497 = vrot.slane %v1495, 6
  %1498 = vrot.lane.b32.xlu0 %v1497, 32
  %v1499 = vpop.permute.xlu0 %1498
  %v1500 = vsel %vm129, %v1499, 0
  %1502 = vmatprep.subr.mxu0 0.0
  %1503 = vmatpush1.msra.mxu0 0.0
  %1504 = vmatprep.subr.mxu0 0.0
  %1505 = vmatpush1.msra.mxu0 0.0
  %1506 = vmatprep.subr.mxu0 0.0
  %1507 = vmatpush1.msra.mxu0 0.0
  %1508 = vmatprep.subr.mxu0 0.0
  %1509 = vmatpush1.msra.mxu0 0.0
  %1510 = vmatprep.subr.mxu0 0.0
  %1511 = vmatpush1.msra.mxu0 0.0
  %1512 = vmatprep.subr.mxu0 0.0
  %1513 = vmatpush1.msra.mxu0 0.0
  %1514 = vmatprep.subr.mxu0 0.0
  %1515 = vmatpush1.msra.mxu0 0.0
  %1516 = vmatprep.subr.mxu0 0.0
  %1517 = vmatpush1.msra.mxu0 0.0
  %1518 = vmatprep.subr.mxu0 0.0
  %1519 = vmatpush1.msra.mxu0 0.0
  %1520 = vmatprep.subr.mxu0 0.0
  %1521 = vmatpush1.msra.mxu0 0.0
  %1522 = vmatprep.subr.mxu0 0.0
  %1523 = vmatpush1.msra.mxu0 0.0
  %1524 = vmatprep.subr.mxu0 0.0
  %1525 = vmatpush1.msra.mxu0 0.0
  %1526 = vmatprep.subr.mxu0 0.0
  %1527 = vmatpush1.msra.mxu0 %v988
  %1528 = vmatprep.subr.mxu0 0.0
  %1529 = vmatpush1.msra.mxu0 %v987
  %1530 = vmatprep.subr.mxu0 0.0
  %1531 = vmatpush1.msra.mxu0 %v986
  %1532 = vmatprep.subr.mxu0 0.0
  %1533 = vmatpush1.msra.mxu0 %v985
  %1534 = vmatprep.subr.mxu0 0.0
  %1535 = vmatpush2.msra.mxu0 0.0
  %1536 = vmatprep.subr.mxu0 0.0
  %1537 = vmatpush2.msra.mxu0 0.0
  %1538 = vmatprep.subr.mxu0 0.0
  %1539 = vmatpush2.msra.mxu0 0.0
  %1540 = vmatprep.subr.mxu0 0.0
  %1541 = vmatpush2.msra.mxu0 0.0
  %1542 = vmatprep.subr.mxu0 0.0
  %1543 = vmatpush2.msra.mxu0 0.0
  %1544 = vmatprep.subr.mxu0 0.0
  %1545 = vmatpush2.msra.mxu0 0.0
  %1546 = vmatprep.subr.mxu0 0.0
  %1547 = vmatpush2.msra.mxu0 0.0
  %1548 = vmatprep.subr.mxu0 0.0
  %1549 = vmatpush2.msra.mxu0 0.0
  %1550 = vmatprep.subr.mxu0 0.0
  %1551 = vmatpush2.msra.mxu0 0.0
  %1552 = vmatprep.subr.mxu0 0.0
  %1553 = vmatpush2.msra.mxu0 0.0
  %1554 = vmatprep.subr.mxu0 0.0
  %1555 = vmatpush2.msra.mxu0 0.0
  %1556 = vmatprep.subr.mxu0 0.0
  %1557 = vmatpush2.msra.mxu0 0.0
  %1558 = vmatprep.subr.mxu0 0.0
  %1559 = vmatpush2.msra.mxu0 0.0
  %1560 = vmatprep.subr.mxu0 0.0
  %1561 = vmatpush2.msra.mxu0 0.0
  %1562 = vmatprep.subr.mxu0 0.0
  %1563 = vmatpush2.msra.mxu0 0.0
  %1564 = vmatprep.subr.mxu0 0.0
  %1565 = vmatpush2.msra.mxu0 0.0
  %1566 = vmatprep.mubr.f32.mxu0 0.0
  %1567 = vmatmul.mubr.f32.gmra.mxu0 %v1500
  %v1568 = vpop.f32.mrf.mxu0
  %v1569 = vadd.f32 0.0, %v1568
  %v1570 = vpop.f32.mrf.mxu0
  %1571 = vdwg.mxu0
  %v1572 = vadd.f32 %v1078, %v1569
  %v1573 = vxor.u32 %v1572, 2147483648
  %v1574 = vmul.f32 %v1573, 1.442695
  %v1575 = vpow.pop %v1574
  %v1576 = vadd.f32 %v1575, 1.0
  %v1577 = vrcp.pop %v1576
  %v1578 = vmul.f32 1.0, %v1577
  %v1579 = vtanh.pop %v1572
  %v1581 = vrot.slane %v1489, 6
  %v1583 = vmul.f32 %v1578, %v1581
  %1585 = vrot.lane.b32.xlu0 %v1579, 64
  %v1586 = vpop.permute.xlu0 %1585
  %v1588 = vmul.f32 %v1578, %v1586
  %1590 = vrot.lane.b32.xlu0 %v1588, 32
  %v1591 = vpop.permute.xlu0 %1590
  %v1593 = vadd.f32 %v1583, %v1591
  %v1594 = vtanh.pop %v1593
  %1596 = vrot.lane.b32.xlu0 %v1594, 64
  %v1597 = vpop.permute.xlu0 %1596
  %v1599 = vmul.f32 %v1578, %v1597
  %1601 = vrot.lane.b32.xlu0 %v1599, 32
  %v1602 = vpop.permute.xlu0 %1601
  %v1603 = vsel %vm129, %v1602, 0
  %1605 = vmatprep.subr.mxu0 0.0
  %1606 = vmatpush1.msra.mxu0 0.0
  %1607 = vmatprep.subr.mxu0 0.0
  %1608 = vmatpush1.msra.mxu0 0.0
  %1609 = vmatprep.subr.mxu0 0.0
  %1610 = vmatpush1.msra.mxu0 0.0
  %1611 = vmatprep.subr.mxu0 0.0
  %1612 = vmatpush1.msra.mxu0 0.0
  %1613 = vmatprep.subr.mxu0 0.0
  %1614 = vmatpush1.msra.mxu0 0.0
  %1615 = vmatprep.subr.mxu0 0.0
  %1616 = vmatpush1.msra.mxu0 0.0
  %1617 = vmatprep.subr.mxu0 0.0
  %1618 = vmatpush1.msra.mxu0 0.0
  %1619 = vmatprep.subr.mxu0 0.0
  %1620 = vmatpush1.msra.mxu0 0.0
  %1621 = vmatprep.subr.mxu0 0.0
  %1622 = vmatpush1.msra.mxu0 0.0
  %1623 = vmatprep.subr.mxu0 0.0
  %1624 = vmatpush1.msra.mxu0 0.0
  %1625 = vmatprep.subr.mxu0 0.0
  %1626 = vmatpush1.msra.mxu0 0.0
  %1627 = vmatprep.subr.mxu0 0.0
  %1628 = vmatpush1.msra.mxu0 0.0
  %1629 = vmatprep.subr.mxu0 0.0
  %1630 = vmatpush1.msra.mxu0 %v988
  %1631 = vmatprep.subr.mxu0 0.0
  %1632 = vmatpush1.msra.mxu0 %v987
  %1633 = vmatprep.subr.mxu0 0.0
  %1634 = vmatpush1.msra.mxu0 %v986
  %1635 = vmatprep.subr.mxu0 0.0
  %1636 = vmatpush1.msra.mxu0 %v985
  %1637 = vmatprep.subr.mxu0 0.0
  %1638 = vmatpush2.msra.mxu0 0.0
  %1639 = vmatprep.subr.mxu0 0.0
  %1640 = vmatpush2.msra.mxu0 0.0
  %1641 = vmatprep.subr.mxu0 0.0
  %1642 = vmatpush2.msra.mxu0 0.0
  %1643 = vmatprep.subr.mxu0 0.0
  %1644 = vmatpush2.msra.mxu0 0.0
  %1645 = vmatprep.subr.mxu0 0.0
  %1646 = vmatpush2.msra.mxu0 0.0
  %1647 = vmatprep.subr.mxu0 0.0
  %1648 = vmatpush2.msra.mxu0 0.0
  %1649 = vmatprep.subr.mxu0 0.0
  %1650 = vmatpush2.msra.mxu0 0.0
  %1651 = vmatprep.subr.mxu0 0.0
  %1652 = vmatpush2.msra.mxu0 0.0
  %1653 = vmatprep.subr.mxu0 0.0
  %1654 = vmatpush2.msra.mxu0 0.0
  %1655 = vmatprep.subr.mxu0 0.0
  %1656 = vmatpush2.msra.mxu0 0.0
  %1657 = vmatprep.subr.mxu0 0.0
  %1658 = vmatpush2.msra.mxu0 0.0
  %1659 = vmatprep.subr.mxu0 0.0
  %1660 = vmatpush2.msra.mxu0 0.0
  %1661 = vmatprep.subr.mxu0 0.0
  %1662 = vmatpush2.msra.mxu0 0.0
  %1663 = vmatprep.subr.mxu0 0.0
  %1664 = vmatpush2.msra.mxu0 0.0
  %1665 = vmatprep.subr.mxu0 0.0
  %1666 = vmatpush2.msra.mxu0 0.0
  %1667 = vmatprep.subr.mxu0 0.0
  %1668 = vmatpush2.msra.mxu0 0.0
  %1669 = vmatprep.mubr.f32.mxu0 0.0
  %1670 = vmatmul.mubr.f32.gmra.mxu0 %v1603
  %v1671 = vpop.f32.mrf.mxu0
  %v1672 = vadd.f32 0.0, %v1671
  %v1673 = vpop.f32.mrf.mxu0
  %1674 = vdwg.mxu0
  %v1676 = vrot.slane %v1672, 6
  %v1678 = vadd.f32 %v1078, %v1676
  %v1679 = vxor.u32 %v1678, 2147483648
  %v1680 = vmul.f32 %v1679, 1.442695
  %v1681 = vpow.pop %v1680
  %v1682 = vadd.f32 %v1681, 1.0
  %v1683 = vrcp.pop %v1682
  %v1684 = vmul.f32 1.0, %v1683
  %v1685 = vtanh.pop %v1678
  %v1687 = vrot.slane %v1593, 6
  %v1689 = vmul.f32 %v1684, %v1687
  %1691 = vrot.lane.b32.xlu0 %v1685, 64
  %v1692 = vpop.permute.xlu0 %1691
  %v1694 = vmul.f32 %v1684, %v1692
  %1696 = vrot.lane.b32.xlu0 %v1694, 32
  %v1697 = vpop.permute.xlu0 %1696
  %v1699 = vadd.f32 %v1689, %v1697
  %v1700 = vtanh.pop %v1699
  %1702 = vrot.lane.b32.xlu0 %v1700, 64
  %v1703 = vpop.permute.xlu0 %1702
  %v1705 = vmul.f32 %v1684, %v1703
  %v1707 = vrot.slane %v1705, 2
  %1708 = vrot.lane.b32.xlu0 %v1707, 32
  %v1709 = vpop.permute.xlu0 %1708
  %v1710 = vsel %vm129, %v1709, 0
  %1712 = vmatprep.subr.mxu0 0.0
  %1713 = vmatpush1.msra.mxu0 0.0
  %1714 = vmatprep.subr.mxu0 0.0
  %1715 = vmatpush1.msra.mxu0 0.0
  %1716 = vmatprep.subr.mxu0 0.0
  %1717 = vmatpush1.msra.mxu0 0.0
  %1718 = vmatprep.subr.mxu0 0.0
  %1719 = vmatpush1.msra.mxu0 0.0
  %1720 = vmatprep.subr.mxu0 0.0
  %1721 = vmatpush1.msra.mxu0 0.0
  %1722 = vmatprep.subr.mxu0 0.0
  %1723 = vmatpush1.msra.mxu0 0.0
  %1724 = vmatprep.subr.mxu0 0.0
  %1725 = vmatpush1.msra.mxu0 0.0
  %1726 = vmatprep.subr.mxu0 0.0
  %1727 = vmatpush1.msra.mxu0 0.0
  %1728 = vmatprep.subr.mxu0 0.0
  %1729 = vmatpush1.msra.mxu0 0.0
  %1730 = vmatprep.subr.mxu0 0.0
  %1731 = vmatpush1.msra.mxu0 0.0
  %1732 = vmatprep.subr.mxu0 0.0
  %1733 = vmatpush1.msra.mxu0 0.0
  %1734 = vmatprep.subr.mxu0 0.0
  %1735 = vmatpush1.msra.mxu0 0.0
  %1736 = vmatprep.subr.mxu0 0.0
  %1737 = vmatpush1.msra.mxu0 %v988
  %1738 = vmatprep.subr.mxu0 0.0
  %1739 = vmatpush1.msra.mxu0 %v987
  %1740 = vmatprep.subr.mxu0 0.0
  %1741 = vmatpush1.msra.mxu0 %v986
  %1742 = vmatprep.subr.mxu0 0.0
  %1743 = vmatpush1.msra.mxu0 %v985
  %1744 = vmatprep.subr.mxu0 0.0
  %1745 = vmatpush2.msra.mxu0 0.0
  %1746 = vmatprep.subr.mxu0 0.0
  %1747 = vmatpush2.msra.mxu0 0.0
  %1748 = vmatprep.subr.mxu0 0.0
  %1749 = vmatpush2.msra.mxu0 0.0
  %1750 = vmatprep.subr.mxu0 0.0
  %1751 = vmatpush2.msra.mxu0 0.0
  %1752 = vmatprep.subr.mxu0 0.0
  %1753 = vmatpush2.msra.mxu0 0.0
  %1754 = vmatprep.subr.mxu0 0.0
  %1755 = vmatpush2.msra.mxu0 0.0
  %1756 = vmatprep.subr.mxu0 0.0
  %1757 = vmatpush2.msra.mxu0 0.0
  %1758 = vmatprep.subr.mxu0 0.0
  %1759 = vmatpush2.msra.mxu0 0.0
  %1760 = vmatprep.subr.mxu0 0.0
  %1761 = vmatpush2.msra.mxu0 0.0
  %1762 = vmatprep.subr.mxu0 0.0
  %1763 = vmatpush2.msra.mxu0 0.0
  %1764 = vmatprep.subr.mxu0 0.0
  %1765 = vmatpush2.msra.mxu0 0.0
  %1766 = vmatprep.subr.mxu0 0.0
  %1767 = vmatpush2.msra.mxu0 0.0
  %1768 = vmatprep.subr.mxu0 0.0
  %1769 = vmatpush2.msra.mxu0 0.0
  %1770 = vmatprep.subr.mxu0 0.0
  %1771 = vmatpush2.msra.mxu0 0.0
  %1772 = vmatprep.subr.mxu0 0.0
  %1773 = vmatpush2.msra.mxu0 0.0
  %1774 = vmatprep.subr.mxu0 0.0
  %1775 = vmatpush2.msra.mxu0 0.0
  %1776 = vmatprep.mubr.f32.mxu0 0.0
  %1777 = vmatmul.mubr.f32.gmra.mxu0 %v1710
  %v1778 = vpop.f32.mrf.mxu0
  %v1779 = vadd.f32 0.0, %v1778
  %v1780 = vpop.f32.mrf.mxu0
  %1781 = vdwg.mxu0
  %v1783 = vrot.slane %v1779, 4
  %v1785 = vadd.f32 %v1078, %v1783
  %v1786 = vxor.u32 %v1785, 2147483648
  %v1787 = vmul.f32 %v1786, 1.442695
  %v1788 = vpow.pop %v1787
  %v1789 = vadd.f32 %v1788, 1.0
  %v1790 = vrcp.pop %v1789
  %v1791 = vmul.f32 1.0, %v1790
  %v1792 = vtanh.pop %v1785
  %v1794 = vrot.slane %v1699, 6
  %v1796 = vmul.f32 %v1791, %v1794
  %1798 = vrot.lane.b32.xlu0 %v1792, 64
  %v1799 = vpop.permute.xlu0 %1798
  %v1801 = vmul.f32 %v1791, %v1799
  %1803 = vrot.lane.b32.xlu0 %v1801, 32
  %v1804 = vpop.permute.xlu0 %1803
  %v1806 = vadd.f32 %v1796, %v1804
  %v1807 = vtanh.pop %v1806
  %1809 = vrot.lane.b32.xlu0 %v1807, 64
  %v1810 = vpop.permute.xlu0 %1809
  %v1812 = vmul.f32 %v1791, %v1810
  %v1814 = vrot.slane %v1812, 4
  %1815 = vrot.lane.b32.xlu0 %v1814, 32
  %v1816 = vpop.permute.xlu0 %1815
  %v1817 = vsel %vm129, %v1816, 0
  %1819 = vmatprep.subr.mxu0 0.0
  %1820 = vmatpush1.msra.mxu0 0.0
  %1821 = vmatprep.subr.mxu0 0.0
  %1822 = vmatpush1.msra.mxu0 0.0
  %1823 = vmatprep.subr.mxu0 0.0
  %1824 = vmatpush1.msra.mxu0 0.0
  %1825 = vmatprep.subr.mxu0 0.0
  %1826 = vmatpush1.msra.mxu0 0.0
  %1827 = vmatprep.subr.mxu0 0.0
  %1828 = vmatpush1.msra.mxu0 0.0
  %1829 = vmatprep.subr.mxu0 0.0
  %1830 = vmatpush1.msra.mxu0 0.0
  %1831 = vmatprep.subr.mxu0 0.0
  %1832 = vmatpush1.msra.mxu0 0.0
  %1833 = vmatprep.subr.mxu0 0.0
  %1834 = vmatpush1.msra.mxu0 0.0
  %1835 = vmatprep.subr.mxu0 0.0
  %1836 = vmatpush1.msra.mxu0 0.0
  %1837 = vmatprep.subr.mxu0 0.0
  %1838 = vmatpush1.msra.mxu0 0.0
  %1839 = vmatprep.subr.mxu0 0.0
  %1840 = vmatpush1.msra.mxu0 0.0
  %1841 = vmatprep.subr.mxu0 0.0
  %1842 = vmatpush1.msra.mxu0 0.0
  %1843 = vmatprep.subr.mxu0 0.0
  %1844 = vmatpush1.msra.mxu0 %v988
  %1845 = vmatprep.subr.mxu0 0.0
  %1846 = vmatpush1.msra.mxu0 %v987
  %1847 = vmatprep.subr.mxu0 0.0
  %1848 = vmatpush1.msra.mxu0 %v986
  %1849 = vmatprep.subr.mxu0 0.0
  %1850 = vmatpush1.msra.mxu0 %v985
  %1851 = vmatprep.subr.mxu0 0.0
  %1852 = vmatpush2.msra.mxu0 0.0
  %1853 = vmatprep.subr.mxu0 0.0
  %1854 = vmatpush2.msra.mxu0 0.0
  %1855 = vmatprep.subr.mxu0 0.0
  %1856 = vmatpush2.msra.mxu0 0.0
  %1857 = vmatprep.subr.mxu0 0.0
  %1858 = vmatpush2.msra.mxu0 0.0
  %1859 = vmatprep.subr.mxu0 0.0
  %1860 = vmatpush2.msra.mxu0 0.0
  %1861 = vmatprep.subr.mxu0 0.0
  %1862 = vmatpush2.msra.mxu0 0.0
  %1863 = vmatprep.subr.mxu0 0.0
  %1864 = vmatpush2.msra.mxu0 0.0
  %1865 = vmatprep.subr.mxu0 0.0
  %1866 = vmatpush2.msra.mxu0 0.0
  %1867 = vmatprep.subr.mxu0 0.0
  %1868 = vmatpush2.msra.mxu0 0.0
  %1869 = vmatprep.subr.mxu0 0.0
  %1870 = vmatpush2.msra.mxu0 0.0
  %1871 = vmatprep.subr.mxu0 0.0
  %1872 = vmatpush2.msra.mxu0 0.0
  %1873 = vmatprep.subr.mxu0 0.0
  %1874 = vmatpush2.msra.mxu0 0.0
  %1875 = vmatprep.subr.mxu0 0.0
  %1876 = vmatpush2.msra.mxu0 0.0
  %1877 = vmatprep.subr.mxu0 0.0
  %1878 = vmatpush2.msra.mxu0 0.0
  %1879 = vmatprep.subr.mxu0 0.0
  %1880 = vmatpush2.msra.mxu0 0.0
  %1881 = vmatprep.subr.mxu0 0.0
  %1882 = vmatpush2.msra.mxu0 0.0
  %1883 = vmatprep.mubr.f32.mxu0 0.0
  %1884 = vmatmul.mubr.f32.gmra.mxu0 %v1817
  %v1885 = vpop.f32.mrf.mxu0
  %v1886 = vadd.f32 0.0, %v1885
  %v1887 = vpop.f32.mrf.mxu0
  %1888 = vdwg.mxu0
  %v1890 = vrot.slane %v1886, 2
  %v1892 = vadd.f32 %v1078, %v1890
  %v1893 = vxor.u32 %v1892, 2147483648
  %v1894 = vmul.f32 %v1893, 1.442695
  %v1895 = vpow.pop %v1894
  %v1896 = vadd.f32 %v1895, 1.0
  %v1897 = vrcp.pop %v1896
  %v1898 = vmul.f32 1.0, %v1897
  %v1899 = vtanh.pop %v1892
  %v1901 = vrot.slane %v1806, 6
  %v1903 = vmul.f32 %v1898, %v1901
  %1905 = vrot.lane.b32.xlu0 %v1899, 64
  %v1906 = vpop.permute.xlu0 %1905
  %v1908 = vmul.f32 %v1898, %v1906
  %1910 = vrot.lane.b32.xlu0 %v1908, 32
  %v1911 = vpop.permute.xlu0 %1910
  %v1913 = vadd.f32 %v1903, %v1911
  %v1914 = vtanh.pop %v1913
  %1916 = vrot.lane.b32.xlu0 %v1914, 64
  %v1917 = vpop.permute.xlu0 %1916
  %v1919 = vmul.f32 %v1898, %v1917
  %v1920 = vld [vmem:[%s7] sm:$0xff]
  %v1921 = vld [vmem:[%s7 + $0x8] sm:$0xff]
  %v1922 = vld [vmem:[%s7 + $0x10] sm:$0xff]
  %v1923 = vld [vmem:[%s7 + $0x18] sm:$0xff]
  %v1924 = vld [vmem:[%s8] sm:$0x1]
  %v1926 = vlaneseq
  %v1927 = vshrl.u32 %v1926, 7
  %v1928 = vsub.s32 0, %v1927
  %v1929 = vrot.slane %v1924, %v1928
  %v1932 = vrot.slane %v1919, 6
  %1933 = vrot.lane.b32.xlu0 %v1932, 32
  %v1934 = vpop.permute.xlu0 %1933
  %v1935 = vsel %vm129, %v1934, 0
  %1937 = vmatprep.subr.mxu0 0.0
  %1938 = vmatpush1.msra.mxu0 0.0
  %1939 = vmatprep.subr.mxu0 0.0
  %1940 = vmatpush1.msra.mxu0 0.0
  %1941 = vmatprep.subr.mxu0 0.0
  %1942 = vmatpush1.msra.mxu0 0.0
  %1943 = vmatprep.subr.mxu0 0.0
  %1944 = vmatpush1.msra.mxu0 0.0
  %1945 = vmatprep.subr.mxu0 0.0
  %1946 = vmatpush1.msra.mxu0 0.0
  %1947 = vmatprep.subr.mxu0 0.0
  %1948 = vmatpush1.msra.mxu0 0.0
  %1949 = vmatprep.subr.mxu0 0.0
  %1950 = vmatpush1.msra.mxu0 0.0
  %1951 = vmatprep.subr.mxu0 0.0
  %1952 = vmatpush1.msra.mxu0 0.0
  %1953 = vmatprep.subr.mxu0 0.0
  %1954 = vmatpush1.msra.mxu0 0.0
  %1955 = vmatprep.subr.mxu0 0.0
  %1956 = vmatpush1.msra.mxu0 0.0
  %1957 = vmatprep.subr.mxu0 0.0
  %1958 = vmatpush1.msra.mxu0 0.0
  %1959 = vmatprep.subr.mxu0 0.0
  %1960 = vmatpush1.msra.mxu0 0.0
  %1961 = vmatprep.subr.mxu0 0.0
  %1962 = vmatpush1.msra.mxu0 %v1923
  %1963 = vmatprep.subr.mxu0 0.0
  %1964 = vmatpush1.msra.mxu0 %v1922
  %1965 = vmatprep.subr.mxu0 0.0
  %1966 = vmatpush1.msra.mxu0 %v1921
  %1967 = vmatprep.subr.mxu0 0.0
  %1968 = vmatpush1.msra.mxu0 %v1920
  %1969 = vmatprep.subr.mxu0 0.0
  %1970 = vmatpush2.msra.mxu0 0.0
  %1971 = vmatprep.subr.mxu0 0.0
  %1972 = vmatpush2.msra.mxu0 0.0
  %1973 = vmatprep.subr.mxu0 0.0
  %1974 = vmatpush2.msra.mxu0 0.0
  %1975 = vmatprep.subr.mxu0 0.0
  %1976 = vmatpush2.msra.mxu0 0.0
  %1977 = vmatprep.subr.mxu0 0.0
  %1978 = vmatpush2.msra.mxu0 0.0
  %1979 = vmatprep.subr.mxu0 0.0
  %1980 = vmatpush2.msra.mxu0 0.0
  %1981 = vmatprep.subr.mxu0 0.0
  %1982 = vmatpush2.msra.mxu0 0.0
  %1983 = vmatprep.subr.mxu0 0.0
  %1984 = vmatpush2.msra.mxu0 0.0
  %1985 = vmatprep.subr.mxu0 0.0
  %1986 = vmatpush2.msra.mxu0 0.0
  %1987 = vmatprep.subr.mxu0 0.0
  %1988 = vmatpush2.msra.mxu0 0.0
  %1989 = vmatprep.subr.mxu0 0.0
  %1990 = vmatpush2.msra.mxu0 0.0
  %1991 = vmatprep.subr.mxu0 0.0
  %1992 = vmatpush2.msra.mxu0 0.0
  %1993 = vmatprep.subr.mxu0 0.0
  %1994 = vmatpush2.msra.mxu0 0.0
  %1995 = vmatprep.subr.mxu0 0.0
  %1996 = vmatpush2.msra.mxu0 0.0
  %1997 = vmatprep.subr.mxu0 0.0
  %1998 = vmatpush2.msra.mxu0 0.0
  %1999 = vmatprep.subr.mxu0 0.0
  %2000 = vmatpush2.msra.mxu0 0.0
  %2001 = vmatprep.mubr.f32.mxu0 0.0
  %2002 = vmatmul.mubr.f32.gmra.mxu0 %v1935
  %v2003 = vpop.f32.mrf.mxu0
  %v2004 = vadd.f32 %v1929, %v2003
  %v2005 = vpop.f32.mrf.mxu0
  %2006 = vdwg.mxu0
  %2007 = vst [vmem:[%s9] sm:$0x3] %v2004
  // Predicated region
  $region38: #{lstm_classifier_forward.1} parent=0 // pred_check
    _
  $region39: #{lstm_classifier_forward.1} parent=0 // pred_check_branch
    %2009 = sbr.rel (0) target = $region41
  $region40: #{lstm_classifier_forward.1} parent=0 // pred_region
    _
  $region41: #{lstm_classifier_forward.1} parent=0 // pred_fallthru
    _
  // Predicated region
  $region42: #{lstm_classifier_forward.1} parent=0 // pred_check
    _
  $region43: #{lstm_classifier_forward.1} parent=0 // pred_check_branch
    %2011 = sbr.rel (0) target = $region45
  $region44: #{lstm_classifier_forward.1} parent=0 // pred_region
    _
  $region45: #{lstm_classifier_forward.1} parent=0 // pred_fallthru
    _

</llo_original>
